<compile_context>
chip_gen: v7x
topology: tpu7x:2x2x1
jax: 0.10.0
libtpu: 0.0.40
codegen_flags: <defaults>
</compile_context>

<pallas_src>
import functools

import jax
import jax.numpy as jnp
import numpy as np
from jax.experimental import pallas as pl
from jax.experimental.pallas import tpu as pltpu


def _shift_lanes(m, s):
    """Zero-filled static shift along the last (lane) dim: out[..., i] = m[..., i+s]."""
    n = m.shape[-1]
    if s == 0:
        return m
    zeros = jnp.zeros(m.shape[:-1] + (abs(s),), m.dtype)
    if s > 0:
        return jnp.concatenate([m[..., s:], zeros], axis=-1)
    return jnp.concatenate([zeros, m[..., : n + s]], axis=-1)


def _cbam_kernel(x_ref, w1t_ref, w2_ref, cmask_ref, rmask_ref, wc_ref, o_ref, *, W):
    # x_ref : (1, C, HW)  one batch element, lane-dense
    # w1t   : (C, Cr) = W1.T   (shared MLP conv1x1 #1, no bias)
    # w2    : (C, Cr) = W2     (shared MLP conv1x1 #2, no bias)
    # cmask : (7, HW) 0/1 column-validity masks for dx = -3..3
    # rmask : (7, HW) 0/1 row-validity    masks for dy = -3..3
    # wc    : SMEM (99,) = conv7x7 weights [c, dy, dx] row-major + bias
    _, C, HW = x_ref.shape

    x = x_ref[0].astype(jnp.float32)                       # (C, HW)

    # ---------------- channel attention ----------------
    avg = jnp.mean(x, axis=-1, keepdims=True)              # (C, 1)
    mxc = jnp.max(x, axis=-1, keepdims=True)               # (C, 1)

    w1t = w1t_ref[...]                                     # (C, Cr)
    w2 = w2_ref[...]                                       # (C, Cr)
    # shared MLP as VPU broadcast-multiply + reduce (no MXU, no concat/slices)
    h_avg = jnp.maximum(jnp.sum(w1t * avg, axis=0, keepdims=True), 0.0)  # (1, Cr)
    h_max = jnp.maximum(jnp.sum(w1t * mxc, axis=0, keepdims=True), 0.0)  # (1, Cr)
    logits = (jnp.sum(w2 * h_avg, axis=1, keepdims=True)
              + jnp.sum(w2 * h_max, axis=1, keepdims=True))              # (C, 1)
    ca = jax.nn.sigmoid(logits)                                          # (C, 1)

    xs = x * ca                                            # channel-refined (C, HW)

    # ---------------- spatial attention ----------------
    mean_map = jnp.mean(xs, axis=0, keepdims=True)         # (1, HW)
    max_map = jnp.max(xs, axis=0, keepdims=True)           # (1, HW)

    cm = cmask_ref[...]                                    # (7, HW)
    rm = rmask_ref[...]                                    # (7, HW)

    # Hoisted dx shifts: 7 column-shifted, edge-masked copies per pooled map.
    shifted = []                                           # shifted[c][dx]: (1, HW)
    for m in (mean_map, max_map):
        shifted.append([_shift_lanes(m, dx - 3) * cm[dx:dx + 1, :]
                        for dx in range(7)])

    # 7x7 "same" conv (2 -> 1 channels) on the flattened maps:
    # 98 scalar*vector MACs + 7 row (dy) shifts + row masks.
    acc = jnp.full((1, HW), wc_ref[98], dtype=jnp.float32)  # bias
    for dy in range(7):
        inner = wc_ref[dy * 7] * shifted[0][0]              # c=0, dx=0 term
        for c in range(2):
            for dx in range(7):
                if c == 0 and dx == 0:
                    continue
                inner = inner + wc_ref[c * 49 + dy * 7 + dx] * shifted[c][dx]
        acc = acc + _shift_lanes(inner, (dy - 3) * W) * rm[dy:dy + 1, :]

    sa = jax.nn.sigmoid(acc)                                # (1, HW)

    o_ref[0] = (xs * sa).astype(o_ref.dtype)


def cbam_forward(x, params):
    B, C, H, W = x.shape
    HW = H * W
    w1 = jnp.asarray(params["ca_w1"], jnp.float32)          # (Cr, C)
    w2 = jnp.asarray(params["ca_w2"], jnp.float32)          # (C, Cr)
    conv_w = jnp.asarray(params["sa_w"], jnp.float32)        # (1, 2, 7, 7)
    conv_b = jnp.asarray(params["sa_b"], jnp.float32)        # (1,)
    Cr = w1.shape[0]

    xf = x.reshape(B, C, HW)                                 # lane-dense view
    w1t = w1.T                                               # (C, Cr)
    wflat = jnp.concatenate([conv_w.reshape(-1), conv_b.reshape(-1)])  # (99,)

    # Static 0/1 validity masks for evaluating the padded 7x7 conv on the
    # flattened maps: cmask kills taps crossing a row boundary (dx), rmask
    # kills taps falling outside the image vertically (dy).
    col = np.arange(HW) % W
    row = np.arange(HW) // W
    cmask = np.stack([(col + d - 3 >= 0) & (col + d - 3 < W) for d in range(7)])
    rmask = np.stack([(row + d - 3 >= 0) & (row + d - 3 < H) for d in range(7)])
    cmask = jnp.asarray(cmask.astype(np.float32))            # (7, HW)
    rmask = jnp.asarray(rmask.astype(np.float32))            # (7, HW)

    # VMEM budget: input + output blocks are double-buffered by the pipeline.
    block_bytes = C * HW * 4
    vmem_limit = int(min(64 * 1024 * 1024,
                         max(16 * 1024 * 1024, 8 * block_bytes)))

    out = pl.pallas_call(
        functools.partial(_cbam_kernel, W=W),
        out_shape=jax.ShapeDtypeStruct((B, C, HW), x.dtype),
        grid=(B,),
        in_specs=[
            pl.BlockSpec((1, C, HW), lambda b: (b, 0, 0)),
            pl.BlockSpec((C, Cr), lambda b: (0, 0)),
            pl.BlockSpec((C, Cr), lambda b: (0, 0)),
            pl.BlockSpec((7, HW), lambda b: (0, 0)),
            pl.BlockSpec((7, HW), lambda b: (0, 0)),
            pl.BlockSpec(memory_space=pltpu.MemorySpace.SMEM),
        ],
        out_specs=pl.BlockSpec((1, C, HW), lambda b: (b, 0, 0)),
        compiler_params=pltpu.CompilerParams(
            dimension_semantics=("parallel",),
            vmem_limit_bytes=vmem_limit,
        ),
    )(xf, w1t, w2, cmask, rmask, wflat)
    return out.reshape(B, C, H, W)


# pure-JAX reference for validation
def cbam_reference(x, params):
    w1, w2 = params["ca_w1"], params["ca_w2"]
    conv_w, conv_b = params["sa_w"], params["sa_b"]
    avg = jnp.mean(x, axis=(2, 3))                           # (B, C)
    mx = jnp.max(x, axis=(2, 3))

    def mlp(v):
        h = jnp.maximum(v @ w1.T, 0.0)
        return h @ w2.T

    ca = jax.nn.sigmoid(mlp(avg) + mlp(mx))[:, :, None, None]
    out = ca * x
    mean_map = jnp.mean(out, axis=1, keepdims=True)
    max_map = jnp.max(out, axis=1, keepdims=True)
    cat = jnp.concatenate([mean_map, max_map], axis=1)       # (B, 2, H, W)
    conv = jax.lax.conv_general_dilated(
        cat, conv_w, (1, 1), ((3, 3), (3, 3)),
        dimension_numbers=("NCHW", "OIHW", "NCHW"),
    )
    sa = jax.nn.sigmoid(conv + conv_b.reshape(1, 1, 1, 1))
    return sa * out


if __name__ == "__main__":
    B, C, H, W = 2, 32, 16, 16   # channel must be >= ratio(16) per module
    ratio = 16
    Cr = C // ratio

    key = jax.random.PRNGKey(0)
    kx, k1, k2, k3, k4 = jax.random.split(key, 5)
    x = jax.random.normal(kx, (B, C, H, W), dtype=jnp.float32)

    params = {
        # shared_MLP: Conv2d(C, C//r, 1, bias=False) -> weight (C//r, C)
        "ca_w1": jax.random.normal(k1, (Cr, C), dtype=jnp.float32) * 0.1,
        # Conv2d(C//r, C, 1, bias=False) -> weight (C, C//r)
        "ca_w2": jax.random.normal(k2, (C, Cr), dtype=jnp.float32) * 0.1,
        # spatial Conv2d(2, 1, 7, padding=3) -> weight (1, 2, 7, 7), bias (1,)
        "sa_w": jax.random.normal(k3, (1, 2, 7, 7), dtype=jnp.float32) * 0.1,
        "sa_b": jax.random.normal(k4, (1,), dtype=jnp.float32) * 0.1,
    }

    out = jax.block_until_ready(cbam_forward(x, params))
    ref = cbam_reference(x, params)

    assert out.shape == (B, C, H, W)
    assert jnp.allclose(out, ref, rtol=1e-5, atol=1e-5), (
        float(jnp.max(jnp.abs(out - ref)))
    )
    print("KERNEL_OK")
</pallas_src>

<mosaic_0001>
module attributes {stable_mosaic.version = 11 : i64} {
  func.func @_cbam_kernel(%arg0: i32, %arg1: memref<1x32x256xf32, #tpu.memory_space<vmem>>, %arg2: memref<32x2xf32, #tpu.memory_space<vmem>>, %arg3: memref<32x2xf32, #tpu.memory_space<vmem>>, %arg4: memref<7x256xf32, #tpu.memory_space<vmem>>, %arg5: memref<7x256xf32, #tpu.memory_space<vmem>>, %arg6: memref<99xf32, #tpu.memory_space<smem>>, %arg7: memref<1x32x256xf32, #tpu.memory_space<vmem>>) attributes {dimension_semantics = [#tpu.dimension_semantics<parallel>], iteration_bounds = array<i64: 2>, scalar_prefetch = 0 : i64, scratch_operands = 0 : i64, tpu.core_type = #tpu.core_type<tc>, window_params = [{transform_indices = @transform_0, window_bounds = array<i64: 1, 32, 256>}, {pipeline_mode = #tpu.pipeline_mode<synchronous>, transform_indices = @transform_1, window_bounds = array<i64: 32, 2>}, {pipeline_mode = #tpu.pipeline_mode<synchronous>, transform_indices = @transform_2, window_bounds = array<i64: 32, 2>}, {pipeline_mode = #tpu.pipeline_mode<synchronous>, transform_indices = @transform_3, window_bounds = array<i64: 7, 256>}, {pipeline_mode = #tpu.pipeline_mode<synchronous>, transform_indices = @transform_4, window_bounds = array<i64: 7, 256>}, {transform_indices = @transform_5, window_bounds = array<i64: 99>}, {transform_indices = @transform_6, window_bounds = array<i64: 1, 32, 256>}]} {
    %c0 = arith.constant 0 : index
    %c0_0 = arith.constant 0 : index
    %c0_1 = arith.constant 0 : index
    %0 = vector.load %arg1[%c0, %c0_0, %c0_1] : memref<1x32x256xf32, #tpu.memory_space<vmem>>, vector<1x32x256xf32>
    %1 = vector.shape_cast %0 : vector<1x32x256xf32> to vector<32x256xf32>
    %cst = arith.constant dense<0.000000e+00> : vector<32xf32>
    %2 = vector.multi_reduction <add>, %1, %cst [1] : vector<32x256xf32> to vector<32xf32>
    %3 = vector.shape_cast %2 : vector<32xf32> to vector<32x1xf32>
    %cst_2 = arith.constant 2.560000e+02 : f32
    %4 = vector.broadcast %cst_2 : f32 to vector<32x1xf32>
    %5 = arith.divf %3, %4 : vector<32x1xf32>
    %cst_3 = arith.constant dense<0xFF800000> : vector<32xf32>
    %6 = vector.multi_reduction <maximumf>, %1, %cst_3 [1] : vector<32x256xf32> to vector<32xf32>
    %7 = vector.shape_cast %6 : vector<32xf32> to vector<32x1xf32>
    %c0_4 = arith.constant 0 : index
    %c0_5 = arith.constant 0 : index
    %8 = vector.load %arg2[%c0_4, %c0_5] : memref<32x2xf32, #tpu.memory_space<vmem>>, vector<32x2xf32>
    %c0_6 = arith.constant 0 : index
    %c0_7 = arith.constant 0 : index
    %9 = vector.load %arg3[%c0_6, %c0_7] : memref<32x2xf32, #tpu.memory_space<vmem>>, vector<32x2xf32>
    %10 = vector.broadcast %5 : vector<32x1xf32> to vector<32x2xf32>
    %11 = arith.mulf %8, %10 : vector<32x2xf32>
    %cst_8 = arith.constant dense<0.000000e+00> : vector<2xf32>
    %12 = vector.multi_reduction <add>, %11, %cst_8 [0] : vector<32x2xf32> to vector<2xf32>
    %13 = vector.shape_cast %12 : vector<2xf32> to vector<1x2xf32>
    %cst_9 = arith.constant 0.000000e+00 : f32
    %14 = vector.broadcast %cst_9 : f32 to vector<1x2xf32>
    %15 = arith.maximumf %13, %14 : vector<1x2xf32>
    %16 = vector.broadcast %7 : vector<32x1xf32> to vector<32x2xf32>
    %17 = arith.mulf %8, %16 : vector<32x2xf32>
    %cst_10 = arith.constant dense<0.000000e+00> : vector<2xf32>
    %18 = vector.multi_reduction <add>, %17, %cst_10 [0] : vector<32x2xf32> to vector<2xf32>
    %19 = vector.shape_cast %18 : vector<2xf32> to vector<1x2xf32>
    %cst_11 = arith.constant 0.000000e+00 : f32
    %20 = vector.broadcast %cst_11 : f32 to vector<1x2xf32>
    %21 = arith.maximumf %19, %20 : vector<1x2xf32>
    %22 = vector.broadcast %15 : vector<1x2xf32> to vector<32x2xf32>
    %23 = arith.mulf %9, %22 : vector<32x2xf32>
    %cst_12 = arith.constant dense<0.000000e+00> : vector<32xf32>
    %24 = vector.multi_reduction <add>, %23, %cst_12 [1] : vector<32x2xf32> to vector<32xf32>
    %25 = vector.shape_cast %24 : vector<32xf32> to vector<32x1xf32>
    %26 = vector.broadcast %21 : vector<1x2xf32> to vector<32x2xf32>
    %27 = arith.mulf %9, %26 : vector<32x2xf32>
    %cst_13 = arith.constant dense<0.000000e+00> : vector<32xf32>
    %28 = vector.multi_reduction <add>, %27, %cst_13 [1] : vector<32x2xf32> to vector<32xf32>
    %29 = vector.shape_cast %28 : vector<32xf32> to vector<32x1xf32>
    %30 = arith.addf %25, %29 : vector<32x1xf32>
    %31 = arith.negf %30 : vector<32x1xf32>
    %32 = math.exp %31 : vector<32x1xf32>
    %cst_14 = arith.constant 1.000000e+00 : f32
    %33 = vector.broadcast %cst_14 : f32 to vector<32x1xf32>
    %34 = arith.addf %33, %32 : vector<32x1xf32>
    %35 = arith.divf %33, %34 : vector<32x1xf32>
    %36 = vector.broadcast %35 : vector<32x1xf32> to vector<32x256xf32>
    %37 = arith.mulf %1, %36 : vector<32x256xf32>
    %cst_15 = arith.constant dense<0.000000e+00> : vector<256xf32>
    %38 = vector.multi_reduction <add>, %37, %cst_15 [0] : vector<32x256xf32> to vector<256xf32>
    %39 = vector.shape_cast %38 : vector<256xf32> to vector<1x256xf32>
    %cst_16 = arith.constant 3.200000e+01 : f32
    %40 = vector.broadcast %cst_16 : f32 to vector<1x256xf32>
    %41 = arith.divf %39, %40 : vector<1x256xf32>
    %cst_17 = arith.constant dense<0xFF800000> : vector<256xf32>
    %42 = vector.multi_reduction <maximumf>, %37, %cst_17 [0] : vector<32x256xf32> to vector<256xf32>
    %43 = vector.shape_cast %42 : vector<256xf32> to vector<1x256xf32>
    %c0_18 = arith.constant 0 : index
    %c0_19 = arith.constant 0 : index
    %44 = vector.load %arg4[%c0_18, %c0_19] : memref<7x256xf32, #tpu.memory_space<vmem>>, vector<7x256xf32>
    %c0_20 = arith.constant 0 : index
    %c0_21 = arith.constant 0 : index
    %45 = vector.load %arg5[%c0_20, %c0_21] : memref<7x256xf32, #tpu.memory_space<vmem>>, vector<7x256xf32>
    %cst_22 = arith.constant 0.000000e+00 : f32
    %46 = vector.broadcast %cst_22 : f32 to vector<1x3xf32>
    %47 = vector.extract_strided_slice %41 {offsets = [0, 0], sizes = [1, 253], strides = [1, 1]} : vector<1x256xf32> to vector<1x253xf32>
    %48 = tpu.concatenate %46, %47 in 1 : vector<1x3xf32>, vector<1x253xf32> -> vector<1x256xf32>
    %49 = vector.extract_strided_slice %44 {offsets = [0, 0], sizes = [1, 256], strides = [1, 1]} : vector<7x256xf32> to vector<1x256xf32>
    %50 = arith.mulf %48, %49 : vector<1x256xf32>
    %cst_23 = arith.constant 0.000000e+00 : f32
    %51 = vector.broadcast %cst_23 : f32 to vector<1x2xf32>
    %52 = vector.extract_strided_slice %41 {offsets = [0, 0], sizes = [1, 254], strides = [1, 1]} : vector<1x256xf32> to vector<1x254xf32>
    %53 = tpu.concatenate %51, %52 in 1 : vector<1x2xf32>, vector<1x254xf32> -> vector<1x256xf32>
    %54 = vector.extract_strided_slice %44 {offsets = [1, 0], sizes = [1, 256], strides = [1, 1]} : vector<7x256xf32> to vector<1x256xf32>
    %55 = arith.mulf %53, %54 : vector<1x256xf32>
    %cst_24 = arith.constant 0.000000e+00 : f32
    %56 = vector.broadcast %cst_24 : f32 to vector<1x1xf32>
    %57 = vector.extract_strided_slice %41 {offsets = [0, 0], sizes = [1, 255], strides = [1, 1]} : vector<1x256xf32> to vector<1x255xf32>
    %58 = tpu.concatenate %56, %57 in 1 : vector<1x1xf32>, vector<1x255xf32> -> vector<1x256xf32>
    %59 = vector.extract_strided_slice %44 {offsets = [2, 0], sizes = [1, 256], strides = [1, 1]} : vector<7x256xf32> to vector<1x256xf32>
    %60 = arith.mulf %58, %59 : vector<1x256xf32>
    %61 = vector.extract_strided_slice %44 {offsets = [3, 0], sizes = [1, 256], strides = [1, 1]} : vector<7x256xf32> to vector<1x256xf32>
    %62 = arith.mulf %41, %61 : vector<1x256xf32>
    %cst_25 = arith.constant 0.000000e+00 : f32
    %63 = vector.broadcast %cst_25 : f32 to vector<1x1xf32>
    %64 = vector.extract_strided_slice %41 {offsets = [0, 1], sizes = [1, 255], strides = [1, 1]} : vector<1x256xf32> to vector<1x255xf32>
    %65 = tpu.concatenate %64, %63 in 1 : vector<1x255xf32>, vector<1x1xf32> -> vector<1x256xf32>
    %66 = vector.extract_strided_slice %44 {offsets = [4, 0], sizes = [1, 256], strides = [1, 1]} : vector<7x256xf32> to vector<1x256xf32>
    %67 = arith.mulf %65, %66 : vector<1x256xf32>
    %cst_26 = arith.constant 0.000000e+00 : f32
    %68 = vector.broadcast %cst_26 : f32 to vector<1x2xf32>
    %69 = vector.extract_strided_slice %41 {offsets = [0, 2], sizes = [1, 254], strides = [1, 1]} : vector<1x256xf32> to vector<1x254xf32>
    %70 = tpu.concatenate %69, %68 in 1 : vector<1x254xf32>, vector<1x2xf32> -> vector<1x256xf32>
    %71 = vector.extract_strided_slice %44 {offsets = [5, 0], sizes = [1, 256], strides = [1, 1]} : vector<7x256xf32> to vector<1x256xf32>
    %72 = arith.mulf %70, %71 : vector<1x256xf32>
    %cst_27 = arith.constant 0.000000e+00 : f32
    %73 = vector.broadcast %cst_27 : f32 to vector<1x3xf32>
    %74 = vector.extract_strided_slice %41 {offsets = [0, 3], sizes = [1, 253], strides = [1, 1]} : vector<1x256xf32> to vector<1x253xf32>
    %75 = tpu.concatenate %74, %73 in 1 : vector<1x253xf32>, vector<1x3xf32> -> vector<1x256xf32>
    %76 = vector.extract_strided_slice %44 {offsets = [6, 0], sizes = [1, 256], strides = [1, 1]} : vector<7x256xf32> to vector<1x256xf32>
    %77 = arith.mulf %75, %76 : vector<1x256xf32>
    %cst_28 = arith.constant 0.000000e+00 : f32
    %78 = vector.broadcast %cst_28 : f32 to vector<1x3xf32>
    %79 = vector.extract_strided_slice %43 {offsets = [0, 0], sizes = [1, 253], strides = [1, 1]} : vector<1x256xf32> to vector<1x253xf32>
    %80 = tpu.concatenate %78, %79 in 1 : vector<1x3xf32>, vector<1x253xf32> -> vector<1x256xf32>
    %81 = vector.extract_strided_slice %44 {offsets = [0, 0], sizes = [1, 256], strides = [1, 1]} : vector<7x256xf32> to vector<1x256xf32>
    %82 = arith.mulf %80, %81 : vector<1x256xf32>
    %cst_29 = arith.constant 0.000000e+00 : f32
    %83 = vector.broadcast %cst_29 : f32 to vector<1x2xf32>
    %84 = vector.extract_strided_slice %43 {offsets = [0, 0], sizes = [1, 254], strides = [1, 1]} : vector<1x256xf32> to vector<1x254xf32>
    %85 = tpu.concatenate %83, %84 in 1 : vector<1x2xf32>, vector<1x254xf32> -> vector<1x256xf32>
    %86 = vector.extract_strided_slice %44 {offsets = [1, 0], sizes = [1, 256], strides = [1, 1]} : vector<7x256xf32> to vector<1x256xf32>
    %87 = arith.mulf %85, %86 : vector<1x256xf32>
    %cst_30 = arith.constant 0.000000e+00 : f32
    %88 = vector.broadcast %cst_30 : f32 to vector<1x1xf32>
    %89 = vector.extract_strided_slice %43 {offsets = [0, 0], sizes = [1, 255], strides = [1, 1]} : vector<1x256xf32> to vector<1x255xf32>
    %90 = tpu.concatenate %88, %89 in 1 : vector<1x1xf32>, vector<1x255xf32> -> vector<1x256xf32>
    %91 = vector.extract_strided_slice %44 {offsets = [2, 0], sizes = [1, 256], strides = [1, 1]} : vector<7x256xf32> to vector<1x256xf32>
    %92 = arith.mulf %90, %91 : vector<1x256xf32>
    %93 = vector.extract_strided_slice %44 {offsets = [3, 0], sizes = [1, 256], strides = [1, 1]} : vector<7x256xf32> to vector<1x256xf32>
    %94 = arith.mulf %43, %93 : vector<1x256xf32>
    %cst_31 = arith.constant 0.000000e+00 : f32
    %95 = vector.broadcast %cst_31 : f32 to vector<1x1xf32>
    %96 = vector.extract_strided_slice %43 {offsets = [0, 1], sizes = [1, 255], strides = [1, 1]} : vector<1x256xf32> to vector<1x255xf32>
    %97 = tpu.concatenate %96, %95 in 1 : vector<1x255xf32>, vector<1x1xf32> -> vector<1x256xf32>
    %98 = vector.extract_strided_slice %44 {offsets = [4, 0], sizes = [1, 256], strides = [1, 1]} : vector<7x256xf32> to vector<1x256xf32>
    %99 = arith.mulf %97, %98 : vector<1x256xf32>
    %cst_32 = arith.constant 0.000000e+00 : f32
    %100 = vector.broadcast %cst_32 : f32 to vector<1x2xf32>
    %101 = vector.extract_strided_slice %43 {offsets = [0, 2], sizes = [1, 254], strides = [1, 1]} : vector<1x256xf32> to vector<1x254xf32>
    %102 = tpu.concatenate %101, %100 in 1 : vector<1x254xf32>, vector<1x2xf32> -> vector<1x256xf32>
    %103 = vector.extract_strided_slice %44 {offsets = [5, 0], sizes = [1, 256], strides = [1, 1]} : vector<7x256xf32> to vector<1x256xf32>
    %104 = arith.mulf %102, %103 : vector<1x256xf32>
    %cst_33 = arith.constant 0.000000e+00 : f32
    %105 = vector.broadcast %cst_33 : f32 to vector<1x3xf32>
    %106 = vector.extract_strided_slice %43 {offsets = [0, 3], sizes = [1, 253], strides = [1, 1]} : vector<1x256xf32> to vector<1x253xf32>
    %107 = tpu.concatenate %106, %105 in 1 : vector<1x253xf32>, vector<1x3xf32> -> vector<1x256xf32>
    %108 = vector.extract_strided_slice %44 {offsets = [6, 0], sizes = [1, 256], strides = [1, 1]} : vector<7x256xf32> to vector<1x256xf32>
    %109 = arith.mulf %107, %108 : vector<1x256xf32>
    %c98 = arith.constant 98 : index
    %110 = memref.load %arg6[%c98] : memref<99xf32, #tpu.memory_space<smem>>
    %111 = vector.broadcast %110 : f32 to vector<1x256xf32>
    %c0_34 = arith.constant 0 : index
    %112 = memref.load %arg6[%c0_34] : memref<99xf32, #tpu.memory_space<smem>>
    %113 = vector.broadcast %112 : f32 to vector<1x256xf32>
    %114 = arith.mulf %113, %50 : vector<1x256xf32>
    %c1 = arith.constant 1 : index
    %115 = memref.load %arg6[%c1] : memref<99xf32, #tpu.memory_space<smem>>
    %116 = vector.broadcast %115 : f32 to vector<1x256xf32>
    %117 = arith.mulf %116, %55 : vector<1x256xf32>
    %118 = arith.addf %114, %117 : vector<1x256xf32>
    %c2 = arith.constant 2 : index
    %119 = memref.load %arg6[%c2] : memref<99xf32, #tpu.memory_space<smem>>
    %120 = vector.broadcast %119 : f32 to vector<1x256xf32>
    %121 = arith.mulf %120, %60 : vector<1x256xf32>
    %122 = arith.addf %118, %121 : vector<1x256xf32>
    %c3 = arith.constant 3 : index
    %123 = memref.load %arg6[%c3] : memref<99xf32, #tpu.memory_space<smem>>
    %124 = vector.broadcast %123 : f32 to vector<1x256xf32>
    %125 = arith.mulf %124, %62 : vector<1x256xf32>
    %126 = arith.addf %122, %125 : vector<1x256xf32>
    %c4 = arith.constant 4 : index
    %127 = memref.load %arg6[%c4] : memref<99xf32, #tpu.memory_space<smem>>
    %128 = vector.broadcast %127 : f32 to vector<1x256xf32>
    %129 = arith.mulf %128, %67 : vector<1x256xf32>
    %130 = arith.addf %126, %129 : vector<1x256xf32>
    %c5 = arith.constant 5 : index
    %131 = memref.load %arg6[%c5] : memref<99xf32, #tpu.memory_space<smem>>
    %132 = vector.broadcast %131 : f32 to vector<1x256xf32>
    %133 = arith.mulf %132, %72 : vector<1x256xf32>
    %134 = arith.addf %130, %133 : vector<1x256xf32>
    %c6 = arith.constant 6 : index
    %135 = memref.load %arg6[%c6] : memref<99xf32, #tpu.memory_space<smem>>
    %136 = vector.broadcast %135 : f32 to vector<1x256xf32>
    %137 = arith.mulf %136, %77 : vector<1x256xf32>
    %138 = arith.addf %134, %137 : vector<1x256xf32>
    %c49 = arith.constant 49 : index
    %139 = memref.load %arg6[%c49] : memref<99xf32, #tpu.memory_space<smem>>
    %140 = vector.broadcast %139 : f32 to vector<1x256xf32>
    %141 = arith.mulf %140, %82 : vector<1x256xf32>
    %142 = arith.addf %138, %141 : vector<1x256xf32>
    %c50 = arith.constant 50 : index
    %143 = memref.load %arg6[%c50] : memref<99xf32, #tpu.memory_space<smem>>
    %144 = vector.broadcast %143 : f32 to vector<1x256xf32>
    %145 = arith.mulf %144, %87 : vector<1x256xf32>
    %146 = arith.addf %142, %145 : vector<1x256xf32>
    %c51 = arith.constant 51 : index
    %147 = memref.load %arg6[%c51] : memref<99xf32, #tpu.memory_space<smem>>
    %148 = vector.broadcast %147 : f32 to vector<1x256xf32>
    %149 = arith.mulf %148, %92 : vector<1x256xf32>
    %150 = arith.addf %146, %149 : vector<1x256xf32>
    %c52 = arith.constant 52 : index
    %151 = memref.load %arg6[%c52] : memref<99xf32, #tpu.memory_space<smem>>
    %152 = vector.broadcast %151 : f32 to vector<1x256xf32>
    %153 = arith.mulf %152, %94 : vector<1x256xf32>
    %154 = arith.addf %150, %153 : vector<1x256xf32>
    %c53 = arith.constant 53 : index
    %155 = memref.load %arg6[%c53] : memref<99xf32, #tpu.memory_space<smem>>
    %156 = vector.broadcast %155 : f32 to vector<1x256xf32>
    %157 = arith.mulf %156, %99 : vector<1x256xf32>
    %158 = arith.addf %154, %157 : vector<1x256xf32>
    %c54 = arith.constant 54 : index
    %159 = memref.load %arg6[%c54] : memref<99xf32, #tpu.memory_space<smem>>
    %160 = vector.broadcast %159 : f32 to vector<1x256xf32>
    %161 = arith.mulf %160, %104 : vector<1x256xf32>
    %162 = arith.addf %158, %161 : vector<1x256xf32>
    %c55 = arith.constant 55 : index
    %163 = memref.load %arg6[%c55] : memref<99xf32, #tpu.memory_space<smem>>
    %164 = vector.broadcast %163 : f32 to vector<1x256xf32>
    %165 = arith.mulf %164, %109 : vector<1x256xf32>
    %166 = arith.addf %162, %165 : vector<1x256xf32>
    %cst_35 = arith.constant 0.000000e+00 : f32
    %167 = vector.broadcast %cst_35 : f32 to vector<1x48xf32>
    %168 = vector.extract_strided_slice %166 {offsets = [0, 0], sizes = [1, 208], strides = [1, 1]} : vector<1x256xf32> to vector<1x208xf32>
    %169 = tpu.concatenate %167, %168 in 1 : vector<1x48xf32>, vector<1x208xf32> -> vector<1x256xf32>
    %170 = vector.extract_strided_slice %45 {offsets = [0, 0], sizes = [1, 256], strides = [1, 1]} : vector<7x256xf32> to vector<1x256xf32>
    %171 = arith.mulf %169, %170 : vector<1x256xf32>
    %172 = arith.addf %111, %171 : vector<1x256xf32>
    %c7 = arith.constant 7 : index
    %173 = memref.load %arg6[%c7] : memref<99xf32, #tpu.memory_space<smem>>
    %174 = vector.broadcast %173 : f32 to vector<1x256xf32>
    %175 = arith.mulf %174, %50 : vector<1x256xf32>
    %c8 = arith.constant 8 : index
    %176 = memref.load %arg6[%c8] : memref<99xf32, #tpu.memory_space<smem>>
    %177 = vector.broadcast %176 : f32 to vector<1x256xf32>
    %178 = arith.mulf %177, %55 : vector<1x256xf32>
    %179 = arith.addf %175, %178 : vector<1x256xf32>
    %c9 = arith.constant 9 : index
    %180 = memref.load %arg6[%c9] : memref<99xf32, #tpu.memory_space<smem>>
    %181 = vector.broadcast %180 : f32 to vector<1x256xf32>
    %182 = arith.mulf %181, %60 : vector<1x256xf32>
    %183 = arith.addf %179, %182 : vector<1x256xf32>
    %c10 = arith.constant 10 : index
    %184 = memref.load %arg6[%c10] : memref<99xf32, #tpu.memory_space<smem>>
    %185 = vector.broadcast %184 : f32 to vector<1x256xf32>
    %186 = arith.mulf %185, %62 : vector<1x256xf32>
    %187 = arith.addf %183, %186 : vector<1x256xf32>
    %c11 = arith.constant 11 : index
    %188 = memref.load %arg6[%c11] : memref<99xf32, #tpu.memory_space<smem>>
    %189 = vector.broadcast %188 : f32 to vector<1x256xf32>
    %190 = arith.mulf %189, %67 : vector<1x256xf32>
    %191 = arith.addf %187, %190 : vector<1x256xf32>
    %c12 = arith.constant 12 : index
    %192 = memref.load %arg6[%c12] : memref<99xf32, #tpu.memory_space<smem>>
    %193 = vector.broadcast %192 : f32 to vector<1x256xf32>
    %194 = arith.mulf %193, %72 : vector<1x256xf32>
    %195 = arith.addf %191, %194 : vector<1x256xf32>
    %c13 = arith.constant 13 : index
    %196 = memref.load %arg6[%c13] : memref<99xf32, #tpu.memory_space<smem>>
    %197 = vector.broadcast %196 : f32 to vector<1x256xf32>
    %198 = arith.mulf %197, %77 : vector<1x256xf32>
    %199 = arith.addf %195, %198 : vector<1x256xf32>
    %c56 = arith.constant 56 : index
    %200 = memref.load %arg6[%c56] : memref<99xf32, #tpu.memory_space<smem>>
    %201 = vector.broadcast %200 : f32 to vector<1x256xf32>
    %202 = arith.mulf %201, %82 : vector<1x256xf32>
    %203 = arith.addf %199, %202 : vector<1x256xf32>
    %c57 = arith.constant 57 : index
    %204 = memref.load %arg6[%c57] : memref<99xf32, #tpu.memory_space<smem>>
    %205 = vector.broadcast %204 : f32 to vector<1x256xf32>
    %206 = arith.mulf %205, %87 : vector<1x256xf32>
    %207 = arith.addf %203, %206 : vector<1x256xf32>
    %c58 = arith.constant 58 : index
    %208 = memref.load %arg6[%c58] : memref<99xf32, #tpu.memory_space<smem>>
    %209 = vector.broadcast %208 : f32 to vector<1x256xf32>
    %210 = arith.mulf %209, %92 : vector<1x256xf32>
    %211 = arith.addf %207, %210 : vector<1x256xf32>
    %c59 = arith.constant 59 : index
    %212 = memref.load %arg6[%c59] : memref<99xf32, #tpu.memory_space<smem>>
    %213 = vector.broadcast %212 : f32 to vector<1x256xf32>
    %214 = arith.mulf %213, %94 : vector<1x256xf32>
    %215 = arith.addf %211, %214 : vector<1x256xf32>
    %c60 = arith.constant 60 : index
    %216 = memref.load %arg6[%c60] : memref<99xf32, #tpu.memory_space<smem>>
    %217 = vector.broadcast %216 : f32 to vector<1x256xf32>
    %218 = arith.mulf %217, %99 : vector<1x256xf32>
    %219 = arith.addf %215, %218 : vector<1x256xf32>
    %c61 = arith.constant 61 : index
    %220 = memref.load %arg6[%c61] : memref<99xf32, #tpu.memory_space<smem>>
    %221 = vector.broadcast %220 : f32 to vector<1x256xf32>
    %222 = arith.mulf %221, %104 : vector<1x256xf32>
    %223 = arith.addf %219, %222 : vector<1x256xf32>
    %c62 = arith.constant 62 : index
    %224 = memref.load %arg6[%c62] : memref<99xf32, #tpu.memory_space<smem>>
    %225 = vector.broadcast %224 : f32 to vector<1x256xf32>
    %226 = arith.mulf %225, %109 : vector<1x256xf32>
    %227 = arith.addf %223, %226 : vector<1x256xf32>
    %cst_36 = arith.constant 0.000000e+00 : f32
    %228 = vector.broadcast %cst_36 : f32 to vector<1x32xf32>
    %229 = vector.extract_strided_slice %227 {offsets = [0, 0], sizes = [1, 224], strides = [1, 1]} : vector<1x256xf32> to vector<1x224xf32>
    %230 = tpu.concatenate %228, %229 in 1 : vector<1x32xf32>, vector<1x224xf32> -> vector<1x256xf32>
    %231 = vector.extract_strided_slice %45 {offsets = [1, 0], sizes = [1, 256], strides = [1, 1]} : vector<7x256xf32> to vector<1x256xf32>
    %232 = arith.mulf %230, %231 : vector<1x256xf32>
    %233 = arith.addf %172, %232 : vector<1x256xf32>
    %c14 = arith.constant 14 : index
    %234 = memref.load %arg6[%c14] : memref<99xf32, #tpu.memory_space<smem>>
    %235 = vector.broadcast %234 : f32 to vector<1x256xf32>
    %236 = arith.mulf %235, %50 : vector<1x256xf32>
    %c15 = arith.constant 15 : index
    %237 = memref.load %arg6[%c15] : memref<99xf32, #tpu.memory_space<smem>>
    %238 = vector.broadcast %237 : f32 to vector<1x256xf32>
    %239 = arith.mulf %238, %55 : vector<1x256xf32>
    %240 = arith.addf %236, %239 : vector<1x256xf32>
    %c16 = arith.constant 16 : index
    %241 = memref.load %arg6[%c16] : memref<99xf32, #tpu.memory_space<smem>>
    %242 = vector.broadcast %241 : f32 to vector<1x256xf32>
    %243 = arith.mulf %242, %60 : vector<1x256xf32>
    %244 = arith.addf %240, %243 : vector<1x256xf32>
    %c17 = arith.constant 17 : index
    %245 = memref.load %arg6[%c17] : memref<99xf32, #tpu.memory_space<smem>>
    %246 = vector.broadcast %245 : f32 to vector<1x256xf32>
    %247 = arith.mulf %246, %62 : vector<1x256xf32>
    %248 = arith.addf %244, %247 : vector<1x256xf32>
    %c18 = arith.constant 18 : index
    %249 = memref.load %arg6[%c18] : memref<99xf32, #tpu.memory_space<smem>>
    %250 = vector.broadcast %249 : f32 to vector<1x256xf32>
    %251 = arith.mulf %250, %67 : vector<1x256xf32>
    %252 = arith.addf %248, %251 : vector<1x256xf32>
    %c19 = arith.constant 19 : index
    %253 = memref.load %arg6[%c19] : memref<99xf32, #tpu.memory_space<smem>>
    %254 = vector.broadcast %253 : f32 to vector<1x256xf32>
    %255 = arith.mulf %254, %72 : vector<1x256xf32>
    %256 = arith.addf %252, %255 : vector<1x256xf32>
    %c20 = arith.constant 20 : index
    %257 = memref.load %arg6[%c20] : memref<99xf32, #tpu.memory_space<smem>>
    %258 = vector.broadcast %257 : f32 to vector<1x256xf32>
    %259 = arith.mulf %258, %77 : vector<1x256xf32>
    %260 = arith.addf %256, %259 : vector<1x256xf32>
    %c63 = arith.constant 63 : index
    %261 = memref.load %arg6[%c63] : memref<99xf32, #tpu.memory_space<smem>>
    %262 = vector.broadcast %261 : f32 to vector<1x256xf32>
    %263 = arith.mulf %262, %82 : vector<1x256xf32>
    %264 = arith.addf %260, %263 : vector<1x256xf32>
    %c64 = arith.constant 64 : index
    %265 = memref.load %arg6[%c64] : memref<99xf32, #tpu.memory_space<smem>>
    %266 = vector.broadcast %265 : f32 to vector<1x256xf32>
    %267 = arith.mulf %266, %87 : vector<1x256xf32>
    %268 = arith.addf %264, %267 : vector<1x256xf32>
    %c65 = arith.constant 65 : index
    %269 = memref.load %arg6[%c65] : memref<99xf32, #tpu.memory_space<smem>>
    %270 = vector.broadcast %269 : f32 to vector<1x256xf32>
    %271 = arith.mulf %270, %92 : vector<1x256xf32>
    %272 = arith.addf %268, %271 : vector<1x256xf32>
    %c66 = arith.constant 66 : index
    %273 = memref.load %arg6[%c66] : memref<99xf32, #tpu.memory_space<smem>>
    %274 = vector.broadcast %273 : f32 to vector<1x256xf32>
    %275 = arith.mulf %274, %94 : vector<1x256xf32>
    %276 = arith.addf %272, %275 : vector<1x256xf32>
    %c67 = arith.constant 67 : index
    %277 = memref.load %arg6[%c67] : memref<99xf32, #tpu.memory_space<smem>>
    %278 = vector.broadcast %277 : f32 to vector<1x256xf32>
    %279 = arith.mulf %278, %99 : vector<1x256xf32>
    %280 = arith.addf %276, %279 : vector<1x256xf32>
    %c68 = arith.constant 68 : index
    %281 = memref.load %arg6[%c68] : memref<99xf32, #tpu.memory_space<smem>>
    %282 = vector.broadcast %281 : f32 to vector<1x256xf32>
    %283 = arith.mulf %282, %104 : vector<1x256xf32>
    %284 = arith.addf %280, %283 : vector<1x256xf32>
    %c69 = arith.constant 69 : index
    %285 = memref.load %arg6[%c69] : memref<99xf32, #tpu.memory_space<smem>>
    %286 = vector.broadcast %285 : f32 to vector<1x256xf32>
    %287 = arith.mulf %286, %109 : vector<1x256xf32>
    %288 = arith.addf %284, %287 : vector<1x256xf32>
    %cst_37 = arith.constant 0.000000e+00 : f32
    %289 = vector.broadcast %cst_37 : f32 to vector<1x16xf32>
    %290 = vector.extract_strided_slice %288 {offsets = [0, 0], sizes = [1, 240], strides = [1, 1]} : vector<1x256xf32> to vector<1x240xf32>
    %291 = tpu.concatenate %289, %290 in 1 : vector<1x16xf32>, vector<1x240xf32> -> vector<1x256xf32>
    %292 = vector.extract_strided_slice %45 {offsets = [2, 0], sizes = [1, 256], strides = [1, 1]} : vector<7x256xf32> to vector<1x256xf32>
    %293 = arith.mulf %291, %292 : vector<1x256xf32>
    %294 = arith.addf %233, %293 : vector<1x256xf32>
    %c21 = arith.constant 21 : index
    %295 = memref.load %arg6[%c21] : memref<99xf32, #tpu.memory_space<smem>>
    %296 = vector.broadcast %295 : f32 to vector<1x256xf32>
    %297 = arith.mulf %296, %50 : vector<1x256xf32>
    %c22 = arith.constant 22 : index
    %298 = memref.load %arg6[%c22] : memref<99xf32, #tpu.memory_space<smem>>
    %299 = vector.broadcast %298 : f32 to vector<1x256xf32>
    %300 = arith.mulf %299, %55 : vector<1x256xf32>
    %301 = arith.addf %297, %300 : vector<1x256xf32>
    %c23 = arith.constant 23 : index
    %302 = memref.load %arg6[%c23] : memref<99xf32, #tpu.memory_space<smem>>
    %303 = vector.broadcast %302 : f32 to vector<1x256xf32>
    %304 = arith.mulf %303, %60 : vector<1x256xf32>
    %305 = arith.addf %301, %304 : vector<1x256xf32>
    %c24 = arith.constant 24 : index
    %306 = memref.load %arg6[%c24] : memref<99xf32, #tpu.memory_space<smem>>
    %307 = vector.broadcast %306 : f32 to vector<1x256xf32>
    %308 = arith.mulf %307, %62 : vector<1x256xf32>
    %309 = arith.addf %305, %308 : vector<1x256xf32>
    %c25 = arith.constant 25 : index
    %310 = memref.load %arg6[%c25] : memref<99xf32, #tpu.memory_space<smem>>
    %311 = vector.broadcast %310 : f32 to vector<1x256xf32>
    %312 = arith.mulf %311, %67 : vector<1x256xf32>
    %313 = arith.addf %309, %312 : vector<1x256xf32>
    %c26 = arith.constant 26 : index
    %314 = memref.load %arg6[%c26] : memref<99xf32, #tpu.memory_space<smem>>
    %315 = vector.broadcast %314 : f32 to vector<1x256xf32>
    %316 = arith.mulf %315, %72 : vector<1x256xf32>
    %317 = arith.addf %313, %316 : vector<1x256xf32>
    %c27 = arith.constant 27 : index
    %318 = memref.load %arg6[%c27] : memref<99xf32, #tpu.memory_space<smem>>
    %319 = vector.broadcast %318 : f32 to vector<1x256xf32>
    %320 = arith.mulf %319, %77 : vector<1x256xf32>
    %321 = arith.addf %317, %320 : vector<1x256xf32>
    %c70 = arith.constant 70 : index
    %322 = memref.load %arg6[%c70] : memref<99xf32, #tpu.memory_space<smem>>
    %323 = vector.broadcast %322 : f32 to vector<1x256xf32>
    %324 = arith.mulf %323, %82 : vector<1x256xf32>
    %325 = arith.addf %321, %324 : vector<1x256xf32>
    %c71 = arith.constant 71 : index
    %326 = memref.load %arg6[%c71] : memref<99xf32, #tpu.memory_space<smem>>
    %327 = vector.broadcast %326 : f32 to vector<1x256xf32>
    %328 = arith.mulf %327, %87 : vector<1x256xf32>
    %329 = arith.addf %325, %328 : vector<1x256xf32>
    %c72 = arith.constant 72 : index
    %330 = memref.load %arg6[%c72] : memref<99xf32, #tpu.memory_space<smem>>
    %331 = vector.broadcast %330 : f32 to vector<1x256xf32>
    %332 = arith.mulf %331, %92 : vector<1x256xf32>
    %333 = arith.addf %329, %332 : vector<1x256xf32>
    %c73 = arith.constant 73 : index
    %334 = memref.load %arg6[%c73] : memref<99xf32, #tpu.memory_space<smem>>
    %335 = vector.broadcast %334 : f32 to vector<1x256xf32>
    %336 = arith.mulf %335, %94 : vector<1x256xf32>
    %337 = arith.addf %333, %336 : vector<1x256xf32>
    %c74 = arith.constant 74 : index
    %338 = memref.load %arg6[%c74] : memref<99xf32, #tpu.memory_space<smem>>
    %339 = vector.broadcast %338 : f32 to vector<1x256xf32>
    %340 = arith.mulf %339, %99 : vector<1x256xf32>
    %341 = arith.addf %337, %340 : vector<1x256xf32>
    %c75 = arith.constant 75 : index
    %342 = memref.load %arg6[%c75] : memref<99xf32, #tpu.memory_space<smem>>
    %343 = vector.broadcast %342 : f32 to vector<1x256xf32>
    %344 = arith.mulf %343, %104 : vector<1x256xf32>
    %345 = arith.addf %341, %344 : vector<1x256xf32>
    %c76 = arith.constant 76 : index
    %346 = memref.load %arg6[%c76] : memref<99xf32, #tpu.memory_space<smem>>
    %347 = vector.broadcast %346 : f32 to vector<1x256xf32>
    %348 = arith.mulf %347, %109 : vector<1x256xf32>
    %349 = arith.addf %345, %348 : vector<1x256xf32>
    %350 = vector.extract_strided_slice %45 {offsets = [3, 0], sizes = [1, 256], strides = [1, 1]} : vector<7x256xf32> to vector<1x256xf32>
    %351 = arith.mulf %349, %350 : vector<1x256xf32>
    %352 = arith.addf %294, %351 : vector<1x256xf32>
    %c28 = arith.constant 28 : index
    %353 = memref.load %arg6[%c28] : memref<99xf32, #tpu.memory_space<smem>>
    %354 = vector.broadcast %353 : f32 to vector<1x256xf32>
    %355 = arith.mulf %354, %50 : vector<1x256xf32>
    %c29 = arith.constant 29 : index
    %356 = memref.load %arg6[%c29] : memref<99xf32, #tpu.memory_space<smem>>
    %357 = vector.broadcast %356 : f32 to vector<1x256xf32>
    %358 = arith.mulf %357, %55 : vector<1x256xf32>
    %359 = arith.addf %355, %358 : vector<1x256xf32>
    %c30 = arith.constant 30 : index
    %360 = memref.load %arg6[%c30] : memref<99xf32, #tpu.memory_space<smem>>
    %361 = vector.broadcast %360 : f32 to vector<1x256xf32>
    %362 = arith.mulf %361, %60 : vector<1x256xf32>
    %363 = arith.addf %359, %362 : vector<1x256xf32>
    %c31 = arith.constant 31 : index
    %364 = memref.load %arg6[%c31] : memref<99xf32, #tpu.memory_space<smem>>
    %365 = vector.broadcast %364 : f32 to vector<1x256xf32>
    %366 = arith.mulf %365, %62 : vector<1x256xf32>
    %367 = arith.addf %363, %366 : vector<1x256xf32>
    %c32 = arith.constant 32 : index
    %368 = memref.load %arg6[%c32] : memref<99xf32, #tpu.memory_space<smem>>
    %369 = vector.broadcast %368 : f32 to vector<1x256xf32>
    %370 = arith.mulf %369, %67 : vector<1x256xf32>
    %371 = arith.addf %367, %370 : vector<1x256xf32>
    %c33 = arith.constant 33 : index
    %372 = memref.load %arg6[%c33] : memref<99xf32, #tpu.memory_space<smem>>
    %373 = vector.broadcast %372 : f32 to vector<1x256xf32>
    %374 = arith.mulf %373, %72 : vector<1x256xf32>
    %375 = arith.addf %371, %374 : vector<1x256xf32>
    %c34 = arith.constant 34 : index
    %376 = memref.load %arg6[%c34] : memref<99xf32, #tpu.memory_space<smem>>
    %377 = vector.broadcast %376 : f32 to vector<1x256xf32>
    %378 = arith.mulf %377, %77 : vector<1x256xf32>
    %379 = arith.addf %375, %378 : vector<1x256xf32>
    %c77 = arith.constant 77 : index
    %380 = memref.load %arg6[%c77] : memref<99xf32, #tpu.memory_space<smem>>
    %381 = vector.broadcast %380 : f32 to vector<1x256xf32>
    %382 = arith.mulf %381, %82 : vector<1x256xf32>
    %383 = arith.addf %379, %382 : vector<1x256xf32>
    %c78 = arith.constant 78 : index
    %384 = memref.load %arg6[%c78] : memref<99xf32, #tpu.memory_space<smem>>
    %385 = vector.broadcast %384 : f32 to vector<1x256xf32>
    %386 = arith.mulf %385, %87 : vector<1x256xf32>
    %387 = arith.addf %383, %386 : vector<1x256xf32>
    %c79 = arith.constant 79 : index
    %388 = memref.load %arg6[%c79] : memref<99xf32, #tpu.memory_space<smem>>
    %389 = vector.broadcast %388 : f32 to vector<1x256xf32>
    %390 = arith.mulf %389, %92 : vector<1x256xf32>
    %391 = arith.addf %387, %390 : vector<1x256xf32>
    %c80 = arith.constant 80 : index
    %392 = memref.load %arg6[%c80] : memref<99xf32, #tpu.memory_space<smem>>
    %393 = vector.broadcast %392 : f32 to vector<1x256xf32>
    %394 = arith.mulf %393, %94 : vector<1x256xf32>
    %395 = arith.addf %391, %394 : vector<1x256xf32>
    %c81 = arith.constant 81 : index
    %396 = memref.load %arg6[%c81] : memref<99xf32, #tpu.memory_space<smem>>
    %397 = vector.broadcast %396 : f32 to vector<1x256xf32>
    %398 = arith.mulf %397, %99 : vector<1x256xf32>
    %399 = arith.addf %395, %398 : vector<1x256xf32>
    %c82 = arith.constant 82 : index
    %400 = memref.load %arg6[%c82] : memref<99xf32, #tpu.memory_space<smem>>
    %401 = vector.broadcast %400 : f32 to vector<1x256xf32>
    %402 = arith.mulf %401, %104 : vector<1x256xf32>
    %403 = arith.addf %399, %402 : vector<1x256xf32>
    %c83 = arith.constant 83 : index
    %404 = memref.load %arg6[%c83] : memref<99xf32, #tpu.memory_space<smem>>
    %405 = vector.broadcast %404 : f32 to vector<1x256xf32>
    %406 = arith.mulf %405, %109 : vector<1x256xf32>
    %407 = arith.addf %403, %406 : vector<1x256xf32>
    %cst_38 = arith.constant 0.000000e+00 : f32
    %408 = vector.broadcast %cst_38 : f32 to vector<1x16xf32>
    %409 = vector.extract_strided_slice %407 {offsets = [0, 16], sizes = [1, 240], strides = [1, 1]} : vector<1x256xf32> to vector<1x240xf32>
    %410 = tpu.concatenate %409, %408 in 1 : vector<1x240xf32>, vector<1x16xf32> -> vector<1x256xf32>
    %411 = vector.extract_strided_slice %45 {offsets = [4, 0], sizes = [1, 256], strides = [1, 1]} : vector<7x256xf32> to vector<1x256xf32>
    %412 = arith.mulf %410, %411 : vector<1x256xf32>
    %413 = arith.addf %352, %412 : vector<1x256xf32>
    %c35 = arith.constant 35 : index
    %414 = memref.load %arg6[%c35] : memref<99xf32, #tpu.memory_space<smem>>
    %415 = vector.broadcast %414 : f32 to vector<1x256xf32>
    %416 = arith.mulf %415, %50 : vector<1x256xf32>
    %c36 = arith.constant 36 : index
    %417 = memref.load %arg6[%c36] : memref<99xf32, #tpu.memory_space<smem>>
    %418 = vector.broadcast %417 : f32 to vector<1x256xf32>
    %419 = arith.mulf %418, %55 : vector<1x256xf32>
    %420 = arith.addf %416, %419 : vector<1x256xf32>
    %c37 = arith.constant 37 : index
    %421 = memref.load %arg6[%c37] : memref<99xf32, #tpu.memory_space<smem>>
    %422 = vector.broadcast %421 : f32 to vector<1x256xf32>
    %423 = arith.mulf %422, %60 : vector<1x256xf32>
    %424 = arith.addf %420, %423 : vector<1x256xf32>
    %c38 = arith.constant 38 : index
    %425 = memref.load %arg6[%c38] : memref<99xf32, #tpu.memory_space<smem>>
    %426 = vector.broadcast %425 : f32 to vector<1x256xf32>
    %427 = arith.mulf %426, %62 : vector<1x256xf32>
    %428 = arith.addf %424, %427 : vector<1x256xf32>
    %c39 = arith.constant 39 : index
    %429 = memref.load %arg6[%c39] : memref<99xf32, #tpu.memory_space<smem>>
    %430 = vector.broadcast %429 : f32 to vector<1x256xf32>
    %431 = arith.mulf %430, %67 : vector<1x256xf32>
    %432 = arith.addf %428, %431 : vector<1x256xf32>
    %c40 = arith.constant 40 : index
    %433 = memref.load %arg6[%c40] : memref<99xf32, #tpu.memory_space<smem>>
    %434 = vector.broadcast %433 : f32 to vector<1x256xf32>
    %435 = arith.mulf %434, %72 : vector<1x256xf32>
    %436 = arith.addf %432, %435 : vector<1x256xf32>
    %c41 = arith.constant 41 : index
    %437 = memref.load %arg6[%c41] : memref<99xf32, #tpu.memory_space<smem>>
    %438 = vector.broadcast %437 : f32 to vector<1x256xf32>
    %439 = arith.mulf %438, %77 : vector<1x256xf32>
    %440 = arith.addf %436, %439 : vector<1x256xf32>
    %c84 = arith.constant 84 : index
    %441 = memref.load %arg6[%c84] : memref<99xf32, #tpu.memory_space<smem>>
    %442 = vector.broadcast %441 : f32 to vector<1x256xf32>
    %443 = arith.mulf %442, %82 : vector<1x256xf32>
    %444 = arith.addf %440, %443 : vector<1x256xf32>
    %c85 = arith.constant 85 : index
    %445 = memref.load %arg6[%c85] : memref<99xf32, #tpu.memory_space<smem>>
    %446 = vector.broadcast %445 : f32 to vector<1x256xf32>
    %447 = arith.mulf %446, %87 : vector<1x256xf32>
    %448 = arith.addf %444, %447 : vector<1x256xf32>
    %c86 = arith.constant 86 : index
    %449 = memref.load %arg6[%c86] : memref<99xf32, #tpu.memory_space<smem>>
    %450 = vector.broadcast %449 : f32 to vector<1x256xf32>
    %451 = arith.mulf %450, %92 : vector<1x256xf32>
    %452 = arith.addf %448, %451 : vector<1x256xf32>
    %c87 = arith.constant 87 : index
    %453 = memref.load %arg6[%c87] : memref<99xf32, #tpu.memory_space<smem>>
    %454 = vector.broadcast %453 : f32 to vector<1x256xf32>
    %455 = arith.mulf %454, %94 : vector<1x256xf32>
    %456 = arith.addf %452, %455 : vector<1x256xf32>
    %c88 = arith.constant 88 : index
    %457 = memref.load %arg6[%c88] : memref<99xf32, #tpu.memory_space<smem>>
    %458 = vector.broadcast %457 : f32 to vector<1x256xf32>
    %459 = arith.mulf %458, %99 : vector<1x256xf32>
    %460 = arith.addf %456, %459 : vector<1x256xf32>
    %c89 = arith.constant 89 : index
    %461 = memref.load %arg6[%c89] : memref<99xf32, #tpu.memory_space<smem>>
    %462 = vector.broadcast %461 : f32 to vector<1x256xf32>
    %463 = arith.mulf %462, %104 : vector<1x256xf32>
    %464 = arith.addf %460, %463 : vector<1x256xf32>
    %c90 = arith.constant 90 : index
    %465 = memref.load %arg6[%c90] : memref<99xf32, #tpu.memory_space<smem>>
    %466 = vector.broadcast %465 : f32 to vector<1x256xf32>
    %467 = arith.mulf %466, %109 : vector<1x256xf32>
    %468 = arith.addf %464, %467 : vector<1x256xf32>
    %cst_39 = arith.constant 0.000000e+00 : f32
    %469 = vector.broadcast %cst_39 : f32 to vector<1x32xf32>
    %470 = vector.extract_strided_slice %468 {offsets = [0, 32], sizes = [1, 224], strides = [1, 1]} : vector<1x256xf32> to vector<1x224xf32>
    %471 = tpu.concatenate %470, %469 in 1 : vector<1x224xf32>, vector<1x32xf32> -> vector<1x256xf32>
    %472 = vector.extract_strided_slice %45 {offsets = [5, 0], sizes = [1, 256], strides = [1, 1]} : vector<7x256xf32> to vector<1x256xf32>
    %473 = arith.mulf %471, %472 : vector<1x256xf32>
    %474 = arith.addf %413, %473 : vector<1x256xf32>
    %c42 = arith.constant 42 : index
    %475 = memref.load %arg6[%c42] : memref<99xf32, #tpu.memory_space<smem>>
    %476 = vector.broadcast %475 : f32 to vector<1x256xf32>
    %477 = arith.mulf %476, %50 : vector<1x256xf32>
    %c43 = arith.constant 43 : index
    %478 = memref.load %arg6[%c43] : memref<99xf32, #tpu.memory_space<smem>>
    %479 = vector.broadcast %478 : f32 to vector<1x256xf32>
    %480 = arith.mulf %479, %55 : vector<1x256xf32>
    %481 = arith.addf %477, %480 : vector<1x256xf32>
    %c44 = arith.constant 44 : index
    %482 = memref.load %arg6[%c44] : memref<99xf32, #tpu.memory_space<smem>>
    %483 = vector.broadcast %482 : f32 to vector<1x256xf32>
    %484 = arith.mulf %483, %60 : vector<1x256xf32>
    %485 = arith.addf %481, %484 : vector<1x256xf32>
    %c45 = arith.constant 45 : index
    %486 = memref.load %arg6[%c45] : memref<99xf32, #tpu.memory_space<smem>>
    %487 = vector.broadcast %486 : f32 to vector<1x256xf32>
    %488 = arith.mulf %487, %62 : vector<1x256xf32>
    %489 = arith.addf %485, %488 : vector<1x256xf32>
    %c46 = arith.constant 46 : index
    %490 = memref.load %arg6[%c46] : memref<99xf32, #tpu.memory_space<smem>>
    %491 = vector.broadcast %490 : f32 to vector<1x256xf32>
    %492 = arith.mulf %491, %67 : vector<1x256xf32>
    %493 = arith.addf %489, %492 : vector<1x256xf32>
    %c47 = arith.constant 47 : index
    %494 = memref.load %arg6[%c47] : memref<99xf32, #tpu.memory_space<smem>>
    %495 = vector.broadcast %494 : f32 to vector<1x256xf32>
    %496 = arith.mulf %495, %72 : vector<1x256xf32>
    %497 = arith.addf %493, %496 : vector<1x256xf32>
    %c48 = arith.constant 48 : index
    %498 = memref.load %arg6[%c48] : memref<99xf32, #tpu.memory_space<smem>>
    %499 = vector.broadcast %498 : f32 to vector<1x256xf32>
    %500 = arith.mulf %499, %77 : vector<1x256xf32>
    %501 = arith.addf %497, %500 : vector<1x256xf32>
    %c91 = arith.constant 91 : index
    %502 = memref.load %arg6[%c91] : memref<99xf32, #tpu.memory_space<smem>>
    %503 = vector.broadcast %502 : f32 to vector<1x256xf32>
    %504 = arith.mulf %503, %82 : vector<1x256xf32>
    %505 = arith.addf %501, %504 : vector<1x256xf32>
    %c92 = arith.constant 92 : index
    %506 = memref.load %arg6[%c92] : memref<99xf32, #tpu.memory_space<smem>>
    %507 = vector.broadcast %506 : f32 to vector<1x256xf32>
    %508 = arith.mulf %507, %87 : vector<1x256xf32>
    %509 = arith.addf %505, %508 : vector<1x256xf32>
    %c93 = arith.constant 93 : index
    %510 = memref.load %arg6[%c93] : memref<99xf32, #tpu.memory_space<smem>>
    %511 = vector.broadcast %510 : f32 to vector<1x256xf32>
    %512 = arith.mulf %511, %92 : vector<1x256xf32>
    %513 = arith.addf %509, %512 : vector<1x256xf32>
    %c94 = arith.constant 94 : index
    %514 = memref.load %arg6[%c94] : memref<99xf32, #tpu.memory_space<smem>>
    %515 = vector.broadcast %514 : f32 to vector<1x256xf32>
    %516 = arith.mulf %515, %94 : vector<1x256xf32>
    %517 = arith.addf %513, %516 : vector<1x256xf32>
    %c95 = arith.constant 95 : index
    %518 = memref.load %arg6[%c95] : memref<99xf32, #tpu.memory_space<smem>>
    %519 = vector.broadcast %518 : f32 to vector<1x256xf32>
    %520 = arith.mulf %519, %99 : vector<1x256xf32>
    %521 = arith.addf %517, %520 : vector<1x256xf32>
    %c96 = arith.constant 96 : index
    %522 = memref.load %arg6[%c96] : memref<99xf32, #tpu.memory_space<smem>>
    %523 = vector.broadcast %522 : f32 to vector<1x256xf32>
    %524 = arith.mulf %523, %104 : vector<1x256xf32>
    %525 = arith.addf %521, %524 : vector<1x256xf32>
    %c97 = arith.constant 97 : index
    %526 = memref.load %arg6[%c97] : memref<99xf32, #tpu.memory_space<smem>>
    %527 = vector.broadcast %526 : f32 to vector<1x256xf32>
    %528 = arith.mulf %527, %109 : vector<1x256xf32>
    %529 = arith.addf %525, %528 : vector<1x256xf32>
    %cst_40 = arith.constant 0.000000e+00 : f32
    %530 = vector.broadcast %cst_40 : f32 to vector<1x48xf32>
    %531 = vector.extract_strided_slice %529 {offsets = [0, 48], sizes = [1, 208], strides = [1, 1]} : vector<1x256xf32> to vector<1x208xf32>
    %532 = tpu.concatenate %531, %530 in 1 : vector<1x208xf32>, vector<1x48xf32> -> vector<1x256xf32>
    %533 = vector.extract_strided_slice %45 {offsets = [6, 0], sizes = [1, 256], strides = [1, 1]} : vector<7x256xf32> to vector<1x256xf32>
    %534 = arith.mulf %532, %533 : vector<1x256xf32>
    %535 = arith.addf %474, %534 : vector<1x256xf32>
    %536 = arith.negf %535 : vector<1x256xf32>
    %537 = math.exp %536 : vector<1x256xf32>
    %cst_41 = arith.constant 1.000000e+00 : f32
    %538 = vector.broadcast %cst_41 : f32 to vector<1x256xf32>
    %539 = arith.addf %538, %537 : vector<1x256xf32>
    %540 = arith.divf %538, %539 : vector<1x256xf32>
    %541 = vector.broadcast %540 : vector<1x256xf32> to vector<32x256xf32>
    %542 = arith.mulf %37, %541 : vector<32x256xf32>
    %c0_42 = arith.constant 0 : index
    %c0_43 = arith.constant 0 : index
    %c0_44 = arith.constant 0 : index
    %543 = vector.load %arg7[%c0_42, %c0_43, %c0_44] : memref<1x32x256xf32, #tpu.memory_space<vmem>>, vector<1x32x256xf32>
    %544 = vector.shape_cast %543 : vector<1x32x256xf32> to vector<32x256xf32>
    %545 = vector.shape_cast %542 : vector<32x256xf32> to vector<1x32x256xf32>
    tpu.vector_store %arg7[%c0_42, %c0_43, %c0_44], %545 {strides = array<i32>} : memref<1x32x256xf32, #tpu.memory_space<vmem>>, vector<1x32x256xf32>,
    return
  }
  func.func @transform_0(%arg0: i32) -> (i32, i32, i32) {
    %c0_i32 = arith.constant 0 : i32
    %c0_i32_0 = arith.constant 0 : i32
    %c0_i32_1 = arith.constant 0 : i32
    return %arg0, %c0_i32, %c0_i32_0 : i32, i32, i32
  }
  func.func @transform_1(%arg0: i32) -> (i32, i32) {
    %c0_i32 = arith.constant 0 : i32
    %c0_i32_0 = arith.constant 0 : i32
    %c0_i32_1 = arith.constant 0 : i32
    return %c0_i32, %c0_i32_0 : i32, i32
  }
  func.func @transform_2(%arg0: i32) -> (i32, i32) {
    %c0_i32 = arith.constant 0 : i32
    %c0_i32_0 = arith.constant 0 : i32
    %c0_i32_1 = arith.constant 0 : i32
    return %c0_i32, %c0_i32_0 : i32, i32
  }
  func.func @transform_3(%arg0: i32) -> (i32, i32) {
    %c0_i32 = arith.constant 0 : i32
    %c0_i32_0 = arith.constant 0 : i32
    %c0_i32_1 = arith.constant 0 : i32
    return %c0_i32, %c0_i32_0 : i32, i32
  }
  func.func @transform_4(%arg0: i32) -> (i32, i32) {
    %c0_i32 = arith.constant 0 : i32
    %c0_i32_0 = arith.constant 0 : i32
    %c0_i32_1 = arith.constant 0 : i32
    return %c0_i32, %c0_i32_0 : i32, i32
  }
  func.func @transform_5(%arg0: i32) -> i32 {
    %c0_i32 = arith.constant 0 : i32
    %c0_i32_0 = arith.constant 0 : i32
    return %c0_i32 : i32
  }
  func.func @transform_6(%arg0: i32) -> (i32, i32, i32) {
    %c0_i32 = arith.constant 0 : i32
    %c0_i32_0 = arith.constant 0 : i32
    %c0_i32_1 = arith.constant 0 : i32
    return %arg0, %c0_i32, %c0_i32_0 : i32, i32, i32
  }
}

</mosaic_0001>

<llo_original>
// kernel: tpu_custom_call.1
$region0: #{tpu_custom_call.1}
  #allocation0 [shape = 'u32[]', space=smem, size = 0x4, offset = 0x4, fixed_abs, tag = 'smem constant byte address 0x4 - core index']
  #allocation1 [shape = 'u32[144,128]{1,0:T(1,128)}', space=vmem, size = 0x12000, scoped, tag = 'internal scratch']
  %s0 = inlined_call_operand.hbm [shape: f32[2,32,256], index: 0, kind: input, shape index: {}]
  %s1 = inlined_call_operand.vmem [shape: f32[32,2], index: 1, kind: input, shape index: {}]
  %s2 = inlined_call_operand.vmem [shape: f32[32,2], index: 2, kind: input, shape index: {}]
  %s3 = inlined_call_operand.vmem [shape: f32[7,256], index: 3, kind: input, shape index: {}]
  %s4 = inlined_call_operand.vmem [shape: f32[7,256], index: 4, kind: input, shape index: {}]
  %s5 = inlined_call_operand.vmem [shape: f32[99], index: 5, kind: input, shape index: {}]
  %s6 = inlined_call_operand.hbm [shape: f32[2,32,256], index: 6, kind: output, shape index: {}]
  %s7 = sld [smem:[#allocation0]]
  $region65: #{tpu_custom_call.1} parent=0
    _
  %s9 = ssub.s32 1, %s7
  %s10 = scalar_select 0, %s9, %s7
  $region1: #{tpu_custom_call.1} parent=0
    #allocation2 [shape = 'u8[65536]{0}', space=vmem, size = 0x10000, scoped, tag = 'input window, operand 0']
    #allocation3 [shape = 's32[2]{0}', space=sflag, size = 0x8, scoped, tag = 'scoped memory for tpu_custom_call.1']
    #allocation4 [shape = 's32[2]{0}', space=sflag, size = 0x8, scoped, tag = 'scoped memory for tpu_custom_call.1']
    #allocation5 [shape = 's32[2]{0}', space=sflag, size = 0x8, scoped, tag = 'scoped memory for tpu_custom_call.1']
    #allocation6 [shape = 'u8[512]{0}', space=smem, size = 0x200, scoped, tag = 'input window, operand 5, single buffered']
    #allocation7 [shape = 'u8[65536]{0}', space=vmem, size = 0x10000, scoped, tag = 'output window, operand 0']
    %11 = vsyncpa [#allocation3], 0
    %s12 = scalar_lea.sflag [#allocation3], 1
    %13 = vsyncpa %s12, 0
    %14 = vsyncpa [#allocation5], 0
    %15 = vsyncpa [#allocation4], 0
    %s16 = scalar_lea.sflag [#allocation4], 1
    %17 = vsyncpa %s16, 0
    loop: start=0, step=1, limit=4
    $region2: #{tpu_custom_call.1} parent=1 // loop_pre_header
      _
    $region3: #{tpu_custom_call.1} parent=1 // loop_header
      %s19 = sphi 0, %s23
      %p20 = scmp.ge.s32.totalorder %s19, 4
      %s29 = sphi 0, %s31
      %s32 = sphi 0, %s29
      %s33 = sphi 0, %s32
      %s49 = sphi 0, %s33
      %s53 = sphi 0, %s53
      %s55 = sphi 0, %s53
      %s56 = sphi 0, %s55
      %s70 = sphi 0, %s56
      %s74 = sphi 0, %s74
      %s76 = sphi 0, %s74
      %s77 = sphi 0, %s76
      %s91 = sphi 0, %s77
      %s95 = sphi 0, %s95
      %s97 = sphi 0, %s95
      %s98 = sphi 0, %s97
      %s112 = sphi 0, %s98
      %s116 = sphi 0, %s116
      %s118 = sphi 0, %s116
      %s119 = sphi 0, %s118
      %s133 = sphi 0, %s119
      %s137 = sphi 0, %s137
      %s139 = sphi 0, %s137
      %s140 = sphi 0, %s139
      %s154 = sphi 0, %s140
      %s160 = sphi 0, %s162
      %s163 = sphi 0, %s160
      %s164 = sphi 0, %s163
      %s180 = sphi 0, %s164
    $region4: #{tpu_custom_call.1} parent=1 // loop_header_branch
      %22 = sbr.rel (%p20) target = $region8
    $region5: #{tpu_custom_call.1} parent=1 // loop_body
      %s24 = ssub.s32 %s19, 1
      %s25 = ssub.s32 %s19, 2
      %s26 = sadd.s32 %s19, 1
      %s27 = ssub.s32 %s19, %s26
      %p28 = scmp.eq.s32.totalorder %s27, 0
      %s30 = sadd.s32 %s29, 1
      %s31 = scalar_select %p28, %s29, %s30
      %p34 = pneg %p28
      %p35 = scmp.eq.s32.totalorder %s19, 1
      %p36 = por %p34, %p35
      %p37 = scmp.ne.s32.totalorder %s29, %s32
      %p38 = scmp.eq.s32.totalorder %s19, 0
      %p39 = por %p37, %p38
      %p40 = scmp.ne.s32.totalorder %s29, %s32
      %p41 = scmp.eq.s32.totalorder %s24, 1
      %p42 = por %p40, %p41
      %p43 = scmp.ne.s32.totalorder %s32, %s33
      %p44 = scmp.eq.s32.totalorder %s24, 0
      %p45 = por %p43, %p44
      %p46 = scmp.ne.s32.totalorder %s32, %s33
      %p47 = scmp.eq.s32.totalorder %s25, 1
      %p48 = por %p46, %p47
      %p50 = scmp.ne.s32.totalorder %s33, %s49
      %p51 = scmp.eq.s32.totalorder %s25, 0
      %p52 = por %p50, %p51
      %s54 = sadd.s32 %s53, 1
      %p57 = scmp.eq.s32.totalorder %s19, 1
      %p58 = scmp.ne.s32.totalorder %s53, %s55
      %p59 = scmp.eq.s32.totalorder %s19, 0
      %p60 = por %p58, %p59
      %p61 = scmp.ne.s32.totalorder %s53, %s55
      %p62 = scmp.eq.s32.totalorder %s24, 1
      %p63 = por %p61, %p62
      %p64 = scmp.ne.s32.totalorder %s55, %s56
      %p65 = scmp.eq.s32.totalorder %s24, 0
      %p66 = por %p64, %p65
      %p67 = scmp.ne.s32.totalorder %s55, %s56
      %p68 = scmp.eq.s32.totalorder %s25, 1
      %p69 = por %p67, %p68
      %p71 = scmp.ne.s32.totalorder %s56, %s70
      %p72 = scmp.eq.s32.totalorder %s25, 0
      %p73 = por %p71, %p72
      %s75 = sadd.s32 %s74, 1
      %p78 = scmp.eq.s32.totalorder %s19, 1
      %p79 = scmp.ne.s32.totalorder %s74, %s76
      %p80 = scmp.eq.s32.totalorder %s19, 0
      %p81 = por %p79, %p80
      %p82 = scmp.ne.s32.totalorder %s74, %s76
      %p83 = scmp.eq.s32.totalorder %s24, 1
      %p84 = por %p82, %p83
      %p85 = scmp.ne.s32.totalorder %s76, %s77
      %p86 = scmp.eq.s32.totalorder %s24, 0
      %p87 = por %p85, %p86
      %p88 = scmp.ne.s32.totalorder %s76, %s77
      %p89 = scmp.eq.s32.totalorder %s25, 1
      %p90 = por %p88, %p89
      %p92 = scmp.ne.s32.totalorder %s77, %s91
      %p93 = scmp.eq.s32.totalorder %s25, 0
      %p94 = por %p92, %p93
      %s96 = sadd.s32 %s95, 1
      %p99 = scmp.eq.s32.totalorder %s19, 1
      %p100 = scmp.ne.s32.totalorder %s95, %s97
      %p101 = scmp.eq.s32.totalorder %s19, 0
      %p102 = por %p100, %p101
      %p103 = scmp.ne.s32.totalorder %s95, %s97
      %p104 = scmp.eq.s32.totalorder %s24, 1
      %p105 = por %p103, %p104
      %p106 = scmp.ne.s32.totalorder %s97, %s98
      %p107 = scmp.eq.s32.totalorder %s24, 0
      %p108 = por %p106, %p107
      %p109 = scmp.ne.s32.totalorder %s97, %s98
      %p110 = scmp.eq.s32.totalorder %s25, 1
      %p111 = por %p109, %p110
      %p113 = scmp.ne.s32.totalorder %s98, %s112
      %p114 = scmp.eq.s32.totalorder %s25, 0
      %p115 = por %p113, %p114
      %s117 = sadd.s32 %s116, 1
      %p120 = scmp.eq.s32.totalorder %s19, 1
      %p121 = scmp.ne.s32.totalorder %s116, %s118
      %p122 = scmp.eq.s32.totalorder %s19, 0
      %p123 = por %p121, %p122
      %p124 = scmp.ne.s32.totalorder %s116, %s118
      %p125 = scmp.eq.s32.totalorder %s24, 1
      %p126 = por %p124, %p125
      %p127 = scmp.ne.s32.totalorder %s118, %s119
      %p128 = scmp.eq.s32.totalorder %s24, 0
      %p129 = por %p127, %p128
      %p130 = scmp.ne.s32.totalorder %s118, %s119
      %p131 = scmp.eq.s32.totalorder %s25, 1
      %p132 = por %p130, %p131
      %p134 = scmp.ne.s32.totalorder %s119, %s133
      %p135 = scmp.eq.s32.totalorder %s25, 0
      %p136 = por %p134, %p135
      %s138 = sadd.s32 %s137, 1
      %p141 = scmp.eq.s32.totalorder %s19, 1
      %p142 = scmp.ne.s32.totalorder %s137, %s139
      %p143 = scmp.eq.s32.totalorder %s19, 0
      %p144 = por %p142, %p143
      %p145 = scmp.ne.s32.totalorder %s137, %s139
      %p146 = scmp.eq.s32.totalorder %s24, 1
      %p147 = por %p145, %p146
      %p148 = scmp.ne.s32.totalorder %s139, %s140
      %p149 = scmp.eq.s32.totalorder %s24, 0
      %p150 = por %p148, %p149
      %p151 = scmp.ne.s32.totalorder %s139, %s140
      %p152 = scmp.eq.s32.totalorder %s25, 1
      %p153 = por %p151, %p152
      %p155 = scmp.ne.s32.totalorder %s140, %s154
      %p156 = scmp.eq.s32.totalorder %s25, 0
      %p157 = por %p155, %p156
      %s158 = ssub.s32 %s19, %s26
      %p159 = scmp.eq.s32.totalorder %s158, 0
      %s161 = sadd.s32 %s160, 1
      %s162 = scalar_select %p159, %s160, %s161
      %p165 = pneg %p159
      %p166 = scmp.eq.s32.totalorder %s19, 1
      %p167 = por %p165, %p166
      %p168 = scmp.ne.s32.totalorder %s160, %s163
      %p169 = scmp.eq.s32.totalorder %s19, 0
      %p170 = por %p168, %p169
      %p171 = scmp.ne.s32.totalorder %s160, %s163
      %p172 = scmp.eq.s32.totalorder %s24, 1
      %p173 = por %p171, %p172
      %p174 = scmp.ne.s32.totalorder %s163, %s164
      %p175 = scmp.eq.s32.totalorder %s24, 0
      %p176 = por %p174, %p175
      %p177 = scmp.ne.s32.totalorder %s163, %s164
      %p178 = scmp.eq.s32.totalorder %s25, 1
      %p179 = por %p177, %p178
      %p181 = scmp.ne.s32.totalorder %s164, %s180
      %p182 = scmp.eq.s32.totalorder %s25, 0
      %p183 = por %p181, %p182
      %p184 = scmp.le.s32.totalorder 1, %s19
      %p185 = scmp.lt.s32.totalorder %s19, 3
      %p186 = pnand %p184, %p185
      %p187 = pneg %p186
      // Predicated region
      $region9: #{tpu_custom_call.1} parent=5 // pred_check
        _
      $region10: #{tpu_custom_call.1} parent=5 // pred_check_branch
        %189 = sbr.rel (%p186) target = $region12
      $region11: #{tpu_custom_call.1} parent=5 // pred_region
        %s190 = ssub.s32 %s19, 1
        // Predicated region
        $region13: #{tpu_custom_call.1} parent=11 // pred_check
          %p191 = pneg %p66
        $region14: #{tpu_custom_call.1} parent=11 // pred_check_branch
          %193 = sbr.rel (%p191) target = $region16
        $region15: #{tpu_custom_call.1} parent=11 // pred_region
          _
        $region16: #{tpu_custom_call.1} parent=11 // pred_fallthru
          _
        // Predicated region
        $region17: #{tpu_custom_call.1} parent=11 // pred_check
          %p194 = pneg %p87
        $region18: #{tpu_custom_call.1} parent=11 // pred_check_branch
          %196 = sbr.rel (%p194) target = $region20
        $region19: #{tpu_custom_call.1} parent=11 // pred_region
          _
        $region20: #{tpu_custom_call.1} parent=11 // pred_fallthru
          _
        // Predicated region
        $region21: #{tpu_custom_call.1} parent=11 // pred_check
          %p197 = pneg %p108
        $region22: #{tpu_custom_call.1} parent=11 // pred_check_branch
          %199 = sbr.rel (%p197) target = $region24
        $region23: #{tpu_custom_call.1} parent=11 // pred_region
          _
        $region24: #{tpu_custom_call.1} parent=11 // pred_fallthru
          _
        // Predicated region
        $region25: #{tpu_custom_call.1} parent=11 // pred_check
          %p200 = pneg %p129
        $region26: #{tpu_custom_call.1} parent=11 // pred_check_branch
          %202 = sbr.rel (%p200) target = $region28
        $region27: #{tpu_custom_call.1} parent=11 // pred_region
          _
        $region28: #{tpu_custom_call.1} parent=11 // pred_fallthru
          _
        // Predicated region
        $region29: #{tpu_custom_call.1} parent=11 // pred_check
          %p203 = pneg %p150
        $region30: #{tpu_custom_call.1} parent=11 // pred_check_branch
          %205 = sbr.rel (%p203) target = $region32
        $region31: #{tpu_custom_call.1} parent=11 // pred_region
          %s207 = ssub.s32 16, 16
          %208 = vsyncadd [#allocation5], %s207
          %s210 = sshll.u32 %s5, 4
          %s211 = int_to_ptr.vmem [resolvable:$true] %s210
          %213 = dma.vmem_to_smem %s211, 16, [#allocation6], [#allocation5]
        $region32: #{tpu_custom_call.1} parent=11 // pred_fallthru
          _
      $region12: #{tpu_custom_call.1} parent=5 // pred_fallthru
        _
      %p214 = scmp.lt.s32.totalorder %s19, 2
      // Predicated region
      $region33: #{tpu_custom_call.1} parent=5 // pred_check
        %p215 = pneg %p214
      $region34: #{tpu_custom_call.1} parent=5 // pred_check_branch
        %217 = sbr.rel (%p215) target = $region36
      $region35: #{tpu_custom_call.1} parent=5 // pred_region
        // Predicated region
        $region37: #{tpu_custom_call.1} parent=35 // pred_check
          %p218 = pneg %p39
        $region38: #{tpu_custom_call.1} parent=35 // pred_check_branch
          %220 = sbr.rel (%p218) target = $region40
        $region39: #{tpu_custom_call.1} parent=35 // pred_region
          %s221 = sand.u32 %s29, 1
          %s222 = scalar_lea.sflag [#allocation3], %s221
          %s223 = sand.u32 %s29, 1
          %s224 = smul.addr %s223, 64
          %s225 = scalar_lea.vmem [#allocation2], %s224
          %s227 = ssub.s32 1024, 1024
          %228 = vsyncadd %s222, %s227
          %s229 = smul.addr %s19, 8
          %s230 = smul.addr %s229, 128
          %s231 = scalar_lea.hbm %s0, %s230
          %s232 = sshll.u32 %s225, 4
          %s233 = int_to_ptr.vmem [resolvable:$true] %s232
          %238 = dma.hbm_to_vmem [thread:$0]  %s231, 1024, %s233, %s222, 256, 256, 16
        $region40: #{tpu_custom_call.1} parent=35 // pred_fallthru
          _
      $region36: #{tpu_custom_call.1} parent=5 // pred_fallthru
        _
      %p239 = scmp.le.s32.totalorder 1, %s19
      %p240 = scmp.lt.s32.totalorder %s19, 3
      %p241 = pnand %p239, %p240
      %p242 = pneg %p241
      // Predicated region
      $region41: #{tpu_custom_call.1} parent=5 // pred_check
        _
      $region42: #{tpu_custom_call.1} parent=5 // pred_check_branch
        %244 = sbr.rel (%p241) target = $region44
      $region43: #{tpu_custom_call.1} parent=5 // pred_region
        %s245 = ssub.s32 %s19, 1
        %s246 = sand.u32 %s32, 1
        %s247 = scalar_lea.sflag [#allocation3], %s246
        %s248 = sand.u32 %s32, 1
        %s249 = smul.addr %s248, 64
        %s250 = scalar_lea.vmem [#allocation2], %s249
        // Predicated region
        $region45: #{tpu_custom_call.1} parent=43 // pred_check
          %p251 = pneg %p45
        $region46: #{tpu_custom_call.1} parent=43 // pred_check_branch
          %253 = sbr.rel (%p251) target = $region48
        $region47: #{tpu_custom_call.1} parent=43 // pred_region
          %254 = dma.done %s247, 1024
        $region48: #{tpu_custom_call.1} parent=43 // pred_fallthru
          _
        // Predicated region
        $region49: #{tpu_custom_call.1} parent=43 // pred_check
          %p255 = pneg %p150
        $region50: #{tpu_custom_call.1} parent=43 // pred_check_branch
          %257 = sbr.rel (%p255) target = $region52
        $region51: #{tpu_custom_call.1} parent=43 // pred_region
          %258 = dma.done [#allocation5], 16
        $region52: #{tpu_custom_call.1} parent=43 // pred_fallthru
          _
        %259 = sfence
        %s260 = sand.u32 %s32, 1
        %s261 = scalar_lea.sflag [#allocation3], %s260
        %s262 = sand.u32 %s32, 1
        %s263 = smul.addr %s262, 64
        %s264 = scalar_lea.vmem [#allocation2], %s263
        %p265 = pneg %p45
        %p266 = pneg %p42
        %p267 = pneg %p66
        %p268 = pneg %p63
        %p269 = pneg %p87
        %p270 = pneg %p84
        %p271 = pneg %p108
        %p272 = pneg %p105
        %p273 = pneg %p129
        %p274 = pneg %p126
        %p275 = pneg %p150
        %p276 = pneg %p147
        %p277 = pneg %p176
        %p278 = pneg %p173
        %s279 = sand.u32 %s163, 1
        %s280 = scalar_lea.sflag [#allocation4], %s279
        %s281 = sand.u32 %s163, 1
        %s282 = smul.addr %s281, 64
        %s283 = scalar_lea.vmem [#allocation7], %s282
        %v284 = vld [vmem:[%s250] sm:$0xff]
        %v285 = vld [vmem:[%s250 + $0x8] sm:$0xff]
        %v286 = vld [vmem:[%s250 + $0x10] sm:$0xff]
        %v287 = vld [vmem:[%s250 + $0x18] sm:$0xff]
        %v288 = vld [vmem:[%s250 + $0x20] sm:$0xff]
        %v289 = vld [vmem:[%s250 + $0x28] sm:$0xff]
        %v290 = vld [vmem:[%s250 + $0x30] sm:$0xff]
        %v291 = vld [vmem:[%s250 + $0x38] sm:$0xff]
        %v292 = vadd.f32 %v284, %v285
        %293 = vadd.xlane.f32.xlu0 %v292
        %v294 = vpop.xlane.xlu0 %293
        %v295 = vadd.f32 %v286, %v287
        %296 = vadd.xlane.f32.xlu0 %v295
        %v297 = vpop.xlane.xlu0 %296
        %v298 = vadd.f32 %v288, %v289
        %299 = vadd.xlane.f32.xlu0 %v298
        %v300 = vpop.xlane.xlu0 %299
        %v301 = vadd.f32 %v290, %v291
        %302 = vadd.xlane.f32.xlu0 %v301
        %v303 = vpop.xlane.xlu0 %302
        %v304 = vrcp.pop 256.0
        %v305 = vmul.f32 %v294, %v304
        %v306 = vmul.f32 %v297, %v304
        %v307 = vmul.f32 %v300, %v304
        %v308 = vmul.f32 %v303, %v304
        %v309 = vmax.f32 %v284, %v285
        %310 = vmax.xlane.f32.xlu0 %v309
        %v311 = vpop.xlane.xlu0 %310
        %v312 = vmax.f32 %v286, %v287
        %313 = vmax.xlane.f32.xlu0 %v312
        %v314 = vpop.xlane.xlu0 %313
        %v315 = vmax.f32 %v288, %v289
        %316 = vmax.xlane.f32.xlu0 %v315
        %v317 = vpop.xlane.xlu0 %316
        %v318 = vmax.f32 %v290, %v291
        %319 = vmax.xlane.f32.xlu0 %v318
        %v320 = vpop.xlane.xlu0 %319
        %v321 = vld [vmem:[%s1] sm:$0xff]
        %v322 = vld [vmem:[%s1 + $0x8] sm:$0xff]
        %v323 = vld [vmem:[%s1 + $0x10] sm:$0xff]
        %v324 = vld [vmem:[%s1 + $0x18] sm:$0xff]
        %v325 = vld [vmem:[%s2] sm:$0xff]
        %v326 = vld [vmem:[%s2 + $0x8] sm:$0xff]
        %v327 = vld [vmem:[%s2 + $0x10] sm:$0xff]
        %v328 = vld [vmem:[%s2 + $0x18] sm:$0xff]
        %v329 = vmul.f32 %v321, %v305
        %v330 = vmul.f32 %v322, %v306
        %v331 = vmul.f32 %v323, %v307
        %v332 = vmul.f32 %v324, %v308
        %vm333 = vcmask 15360
        %v334 = vsel %vm333, %v329, 0.0
        %v335 = vsel %vm333, %v330, 0.0
        %v336 = vadd.f32 %v334, %v335
        %v337 = vsel %vm333, %v331, 0.0
        %v338 = vadd.f32 %v336, %v337
        %v339 = vsel %vm333, %v332, 0.0
        %v340 = vadd.f32 %v338, %v339
        %v341 = vrot.slane %v340, 4
        %v342 = vadd.f32 %v340, %v341
        %v343 = vrot.slane %v342, 2
        %v344 = vadd.f32 %v342, %v343
        %v345 = vrot.slane %v344, 1
        %v346 = vadd.f32 %v344, %v345
        %v347 = vmax.f32 %v346, 0.0
        %v348 = vmul.f32 %v321, %v311
        %v349 = vmul.f32 %v322, %v314
        %v350 = vmul.f32 %v323, %v317
        %v351 = vmul.f32 %v324, %v320
        %v352 = vsel %vm333, %v348, 0.0
        %v353 = vsel %vm333, %v349, 0.0
        %v354 = vadd.f32 %v352, %v353
        %v355 = vsel %vm333, %v350, 0.0
        %v356 = vadd.f32 %v354, %v355
        %v357 = vsel %vm333, %v351, 0.0
        %v358 = vadd.f32 %v356, %v357
        %v359 = vrot.slane %v358, 4
        %v360 = vadd.f32 %v358, %v359
        %v361 = vrot.slane %v360, 2
        %v362 = vadd.f32 %v360, %v361
        %v363 = vrot.slane %v362, 1
        %v364 = vadd.f32 %v362, %v363
        %v365 = vmax.f32 %v364, 0.0
        %v366 = vmul.f32 %v325, %v347
        %v367 = vmul.f32 %v326, %v347
        %v368 = vmul.f32 %v327, %v347
        %v369 = vmul.f32 %v328, %v347
        %v370 = vsel %vm333, %v366, 0.0
        %371 = vadd.xlane.f32.xlu0 %v370
        %v372 = vpop.xlane.xlu0 %371
        %v373 = vsel %vm333, %v367, 0.0
        %374 = vadd.xlane.f32.xlu0 %v373
        %v375 = vpop.xlane.xlu0 %374
        %v376 = vsel %vm333, %v368, 0.0
        %377 = vadd.xlane.f32.xlu0 %v376
        %v378 = vpop.xlane.xlu0 %377
        %v379 = vsel %vm333, %v369, 0.0
        %380 = vadd.xlane.f32.xlu0 %v379
        %v381 = vpop.xlane.xlu0 %380
        %v382 = vmul.f32 %v325, %v365
        %v383 = vmul.f32 %v326, %v365
        %v384 = vmul.f32 %v327, %v365
        %v385 = vmul.f32 %v328, %v365
        %v386 = vsel %vm333, %v382, 0.0
        %387 = vadd.xlane.f32.xlu0 %v386
        %v388 = vpop.xlane.xlu0 %387
        %v389 = vsel %vm333, %v383, 0.0
        %390 = vadd.xlane.f32.xlu0 %v389
        %v391 = vpop.xlane.xlu0 %390
        %v392 = vsel %vm333, %v384, 0.0
        %393 = vadd.xlane.f32.xlu0 %v392
        %v394 = vpop.xlane.xlu0 %393
        %v395 = vsel %vm333, %v385, 0.0
        %396 = vadd.xlane.f32.xlu0 %v395
        %v397 = vpop.xlane.xlu0 %396
        %v398 = vadd.f32 %v372, %v388
        %v399 = vadd.f32 %v375, %v391
        %v400 = vadd.f32 %v378, %v394
        %v401 = vadd.f32 %v381, %v397
        %v402 = vxor.u32 %v398, 2147483648
        %v403 = vxor.u32 %v399, 2147483648
        %v404 = vxor.u32 %v400, 2147483648
        %v405 = vxor.u32 %v401, 2147483648
        %v406 = vmul.f32 %v402, 1.442695
        %v407 = vpow.pop %v406
        %v408 = vmul.f32 %v403, 1.442695
        %v409 = vpow.pop %v408
        %v410 = vmul.f32 %v404, 1.442695
        %v411 = vpow.pop %v410
        %v412 = vmul.f32 %v405, 1.442695
        %v413 = vpow.pop %v412
        %v414 = vadd.f32 %v407, 1.0
        %v415 = vadd.f32 %v409, 1.0
        %v416 = vadd.f32 %v411, 1.0
        %v417 = vadd.f32 %v413, 1.0
        %v418 = vrcp.pop %v414
        %v419 = vmul.f32 1.0, %v418
        %v420 = vrcp.pop %v415
        %v421 = vmul.f32 1.0, %v420
        %v422 = vrcp.pop %v416
        %v423 = vmul.f32 1.0, %v422
        %v424 = vrcp.pop %v417
        %v425 = vmul.f32 1.0, %v424
        %v426 = vmul.f32 %v284, %v419
        %v427 = vmul.f32 %v285, %v419
        %v428 = vmul.f32 %v286, %v421
        %v429 = vmul.f32 %v287, %v421
        %v430 = vmul.f32 %v288, %v423
        %v431 = vmul.f32 %v289, %v423
        %v432 = vmul.f32 %v290, %v425
        %v433 = vmul.f32 %v291, %v425
        %v434 = vadd.f32 %v426, %v428
        %v435 = vadd.f32 %v434, %v430
        %v436 = vadd.f32 %v435, %v432
        %v437 = vrot.slane %v436, 4
        %v438 = vadd.f32 %v436, %v437
        %v439 = vrot.slane %v438, 2
        %v440 = vadd.f32 %v438, %v439
        %v441 = vrot.slane %v440, 1
        %v442 = vadd.f32 %v440, %v441
        %v443 = vadd.f32 %v427, %v429
        %v444 = vadd.f32 %v443, %v431
        %v445 = vadd.f32 %v444, %v433
        %v446 = vrot.slane %v445, 4
        %v447 = vadd.f32 %v445, %v446
        %v448 = vrot.slane %v447, 2
        %v449 = vadd.f32 %v447, %v448
        %v450 = vrot.slane %v449, 1
        %v451 = vadd.f32 %v449, %v450
        %v452 = vrcp.pop 32.0
        %v453 = vmul.f32 %v442, %v452
        %v454 = vmul.f32 %v451, %v452
        %v455 = vmax.f32 %v426, %v430
        %v456 = vmax.f32 %v428, %v432
        %v457 = vmax.f32 %v455, %v456
        %v458 = vrot.slane %v457, 4
        %v459 = vmax.f32 %v457, %v458
        %v460 = vrot.slane %v459, 2
        %v461 = vmax.f32 %v459, %v460
        %v462 = vrot.slane %v461, 1
        %v463 = vmax.f32 %v461, %v462
        %v464 = vmax.f32 %v427, %v431
        %v465 = vmax.f32 %v429, %v433
        %v466 = vmax.f32 %v464, %v465
        %v467 = vrot.slane %v466, 4
        %v468 = vmax.f32 %v466, %v467
        %v469 = vrot.slane %v468, 2
        %v470 = vmax.f32 %v468, %v469
        %v471 = vrot.slane %v470, 1
        %v472 = vmax.f32 %v470, %v471
        %v473 = vld [vmem:[%s3] sm:$0x7f]
        %v474 = vld [vmem:[%s3 + $0x8] sm:$0x7f]
        %v475 = vld [vmem:[%s4] sm:$0x7f]
        %v476 = vld [vmem:[%s4 + $0x8] sm:$0x7f]
        %479 = vrot.lane.b32.xlu0 %v453, 3
        %v480 = vpop.permute.xlu0 %479
        %481 = vrot.lane.b32.xlu0 %v454, 3
        %v482 = vpop.permute.xlu0 %481
        %vm483 = vcmask 23552
        %v484 = vsel %vm483, %v480, %v482
        %v487 = vsel %vm483, 0.0, %v480
        %v488 = vmul.f32 %v487, %v473
        %v489 = vmul.f32 %v484, %v474
        %490 = vrot.lane.b32.xlu0 %v453, 2
        %v491 = vpop.permute.xlu0 %490
        %492 = vrot.lane.b32.xlu0 %v454, 2
        %v493 = vpop.permute.xlu0 %492
        %v494 = vsel %vm333, %v491, %v493
        %v497 = vsel %vm333, 0.0, %v491
        %v500 = vrot.slane %v473, 1
        %v501 = vrot.slane %v474, 1
        %v504 = vmul.f32 %v497, %v500
        %v505 = vmul.f32 %v494, %v501
        %506 = vrot.lane.b32.xlu0 %v453, 1
        %v507 = vpop.permute.xlu0 %506
        %508 = vrot.lane.b32.xlu0 %v454, 1
        %v509 = vpop.permute.xlu0 %508
        %vm510 = vcmask 7168
        %v511 = vsel %vm510, %v507, %v509
        %v514 = vsel %vm510, 0.0, %v507
        %v515 = vrot.slane %v473, 2
        %v516 = vrot.slane %v474, 2
        %v519 = vmul.f32 %v514, %v515
        %v520 = vmul.f32 %v511, %v516
        %v521 = vmul.f32 %v453, %v473
        %v522 = vmul.f32 %v454, %v474
        %523 = vrot.lane.b32.xlu0 %v453, 127
        %v524 = vpop.permute.xlu0 %523
        %525 = vrot.lane.b32.xlu0 %v454, 127
        %v526 = vpop.permute.xlu0 %525
        %vm527 = vcmask 1039360
        %v528 = vsel %vm527, %v524, %v526
        %v531 = vsel %vm527, %v526, 0.0
        %v532 = vrot.slane %v473, 4
        %v533 = vrot.slane %v474, 4
        %v536 = vmul.f32 %v528, %v532
        %v537 = vmul.f32 %v531, %v533
        %538 = vrot.lane.b32.xlu0 %v453, 126
        %v539 = vpop.permute.xlu0 %538
        %540 = vrot.lane.b32.xlu0 %v454, 126
        %v541 = vpop.permute.xlu0 %540
        %vm542 = vcmask 1031168
        %v543 = vsel %vm542, %v539, %v541
        %v546 = vsel %vm542, %v541, 0.0
        %v547 = vrot.slane %v473, 5
        %v548 = vrot.slane %v474, 5
        %v551 = vmul.f32 %v543, %v547
        %v552 = vmul.f32 %v546, %v548
        %553 = vrot.lane.b32.xlu0 %v453, 125
        %v554 = vpop.permute.xlu0 %553
        %555 = vrot.lane.b32.xlu0 %v454, 125
        %v556 = vpop.permute.xlu0 %555
        %vm557 = vcmask 1022976
        %v558 = vsel %vm557, %v554, %v556
        %v561 = vsel %vm557, %v556, 0.0
        %v562 = vrot.slane %v473, 6
        %v563 = vrot.slane %v474, 6
        %v566 = vmul.f32 %v558, %v562
        %v567 = vmul.f32 %v561, %v563
        %570 = vrot.lane.b32.xlu0 %v463, 3
        %v571 = vpop.permute.xlu0 %570
        %572 = vrot.lane.b32.xlu0 %v472, 3
        %v573 = vpop.permute.xlu0 %572
        %v574 = vsel %vm483, %v571, %v573
        %v577 = vsel %vm483, 0.0, %v571
        %v578 = vmul.f32 %v577, %v473
        %v579 = vmul.f32 %v574, %v474
        %580 = vrot.lane.b32.xlu0 %v463, 2
        %v581 = vpop.permute.xlu0 %580
        %582 = vrot.lane.b32.xlu0 %v472, 2
        %v583 = vpop.permute.xlu0 %582
        %v584 = vsel %vm333, %v581, %v583
        %v587 = vsel %vm333, 0.0, %v581
        %v588 = vmul.f32 %v587, %v500
        %v589 = vmul.f32 %v584, %v501
        %590 = vrot.lane.b32.xlu0 %v463, 1
        %v591 = vpop.permute.xlu0 %590
        %592 = vrot.lane.b32.xlu0 %v472, 1
        %v593 = vpop.permute.xlu0 %592
        %v594 = vsel %vm510, %v591, %v593
        %v597 = vsel %vm510, 0.0, %v591
        %v598 = vmul.f32 %v597, %v515
        %v599 = vmul.f32 %v594, %v516
        %v600 = vmul.f32 %v463, %v473
        %v601 = vmul.f32 %v472, %v474
        %602 = vrot.lane.b32.xlu0 %v463, 127
        %v603 = vpop.permute.xlu0 %602
        %604 = vrot.lane.b32.xlu0 %v472, 127
        %v605 = vpop.permute.xlu0 %604
        %v606 = vsel %vm527, %v603, %v605
        %v609 = vsel %vm527, %v605, 0.0
        %v610 = vmul.f32 %v606, %v532
        %v611 = vmul.f32 %v609, %v533
        %612 = vrot.lane.b32.xlu0 %v463, 126
        %v613 = vpop.permute.xlu0 %612
        %614 = vrot.lane.b32.xlu0 %v472, 126
        %v615 = vpop.permute.xlu0 %614
        %v616 = vsel %vm542, %v613, %v615
        %v619 = vsel %vm542, %v615, 0.0
        %v620 = vmul.f32 %v616, %v547
        %v621 = vmul.f32 %v619, %v548
        %622 = vrot.lane.b32.xlu0 %v463, 125
        %v623 = vpop.permute.xlu0 %622
        %624 = vrot.lane.b32.xlu0 %v472, 125
        %v625 = vpop.permute.xlu0 %624
        %v626 = vsel %vm557, %v623, %v625
        %v629 = vsel %vm557, %v625, 0.0
        %v630 = vmul.f32 %v626, %v562
        %v631 = vmul.f32 %v629, %v563
        %s632 = sld [smem:[#allocation6 + $0x62]]
        %v633 = vstv %s632
        %s634 = sld [smem:[#allocation6]]
        %v635 = vstv %s634
        %v636 = vmul.f32 %v635, %v488
        %v637 = vmul.f32 %v635, %v489
        %s638 = sld [smem:[#allocation6 + $0x1]]
        %v639 = vstv %s638
        %v640 = vmul.f32 %v639, %v504
        %v641 = vmul.f32 %v639, %v505
        %v642 = vadd.f32 %v636, %v640
        %v643 = vadd.f32 %v637, %v641
        %s644 = sld [smem:[#allocation6 + $0x2]]
        %v645 = vstv %s644
        %v646 = vmul.f32 %v645, %v519
        %v647 = vmul.f32 %v645, %v520
        %v648 = vadd.f32 %v642, %v646
        %v649 = vadd.f32 %v643, %v647
        %s650 = sld [smem:[#allocation6 + $0x3]]
        %v651 = vstv %s650
        %v652 = vmul.f32 %v651, %v521
        %v653 = vmul.f32 %v651, %v522
        %v656 = vrot.slane %v652, 3
        %v657 = vrot.slane %v653, 3
        %v660 = vadd.f32 %v648, %v656
        %v661 = vadd.f32 %v649, %v657
        %s662 = sld [smem:[#allocation6 + $0x4]]
        %v663 = vstv %s662
        %v664 = vmul.f32 %v663, %v536
        %v665 = vmul.f32 %v663, %v537
        %v666 = vadd.f32 %v660, %v664
        %v667 = vadd.f32 %v661, %v665
        %s668 = sld [smem:[#allocation6 + $0x5]]
        %v669 = vstv %s668
        %v670 = vmul.f32 %v669, %v551
        %v671 = vmul.f32 %v669, %v552
        %v672 = vadd.f32 %v666, %v670
        %v673 = vadd.f32 %v667, %v671
        %s674 = sld [smem:[#allocation6 + $0x6]]
        %v675 = vstv %s674
        %v676 = vmul.f32 %v675, %v566
        %v677 = vmul.f32 %v675, %v567
        %v678 = vadd.f32 %v672, %v676
        %v679 = vadd.f32 %v673, %v677
        %s680 = sld [smem:[#allocation6 + $0x31]]
        %v681 = vstv %s680
        %v682 = vmul.f32 %v681, %v578
        %v683 = vmul.f32 %v681, %v579
        %v684 = vadd.f32 %v678, %v682
        %v685 = vadd.f32 %v679, %v683
        %s686 = sld [smem:[#allocation6 + $0x32]]
        %v687 = vstv %s686
        %v688 = vmul.f32 %v687, %v588
        %v689 = vmul.f32 %v687, %v589
        %v690 = vadd.f32 %v684, %v688
        %v691 = vadd.f32 %v685, %v689
        %s692 = sld [smem:[#allocation6 + $0x33]]
        %v693 = vstv %s692
        %v694 = vmul.f32 %v693, %v598
        %v695 = vmul.f32 %v693, %v599
        %v696 = vadd.f32 %v690, %v694
        %v697 = vadd.f32 %v691, %v695
        %s698 = sld [smem:[#allocation6 + $0x34]]
        %v699 = vstv %s698
        %v700 = vmul.f32 %v699, %v600
        %v701 = vmul.f32 %v699, %v601
        %v704 = vrot.slane %v700, 3
        %v705 = vrot.slane %v701, 3
        %v708 = vadd.f32 %v696, %v704
        %v709 = vadd.f32 %v697, %v705
        %s710 = sld [smem:[#allocation6 + $0x35]]
        %v711 = vstv %s710
        %v712 = vmul.f32 %v711, %v610
        %v713 = vmul.f32 %v711, %v611
        %v714 = vadd.f32 %v708, %v712
        %v715 = vadd.f32 %v709, %v713
        %s716 = sld [smem:[#allocation6 + $0x36]]
        %v717 = vstv %s716
        %v718 = vmul.f32 %v717, %v620
        %v719 = vmul.f32 %v717, %v621
        %v720 = vadd.f32 %v714, %v718
        %v721 = vadd.f32 %v715, %v719
        %s722 = sld [smem:[#allocation6 + $0x37]]
        %v723 = vstv %s722
        %v724 = vmul.f32 %v723, %v630
        %v725 = vmul.f32 %v723, %v631
        %v726 = vadd.f32 %v720, %v724
        %v727 = vadd.f32 %v721, %v725
        %730 = vrot.lane.b32.xlu0 %v726, 48
        %v731 = vpop.permute.xlu0 %730
        %732 = vrot.lane.b32.xlu0 %v727, 48
        %v733 = vpop.permute.xlu0 %732
        %vm734 = vcmask 392192
        %v735 = vsel %vm734, %v731, %v733
        %v738 = vsel %vm734, 0.0, %v731
        %v739 = vmul.f32 %v738, %v475
        %v740 = vmul.f32 %v735, %v476
        %v741 = vadd.f32 %v633, %v739
        %v742 = vadd.f32 %v633, %v740
        %s743 = sld [smem:[#allocation6 + $0x7]]
        %v744 = vstv %s743
        %v745 = vmul.f32 %v744, %v488
        %v746 = vmul.f32 %v744, %v489
        %s747 = sld [smem:[#allocation6 + $0x8]]
        %v748 = vstv %s747
        %v749 = vmul.f32 %v748, %v504
        %v750 = vmul.f32 %v748, %v505
        %v751 = vadd.f32 %v745, %v749
        %v752 = vadd.f32 %v746, %v750
        %s753 = sld [smem:[#allocation6 + $0x9]]
        %v754 = vstv %s753
        %v755 = vmul.f32 %v754, %v519
        %v756 = vmul.f32 %v754, %v520
        %v757 = vadd.f32 %v751, %v755
        %v758 = vadd.f32 %v752, %v756
        %s759 = sld [smem:[#allocation6 + $0xa]]
        %v760 = vstv %s759
        %v761 = vmul.f32 %v760, %v521
        %v762 = vmul.f32 %v760, %v522
        %v765 = vrot.slane %v761, 3
        %v766 = vrot.slane %v762, 3
        %v769 = vadd.f32 %v757, %v765
        %v770 = vadd.f32 %v758, %v766
        %s771 = sld [smem:[#allocation6 + $0xb]]
        %v772 = vstv %s771
        %v773 = vmul.f32 %v772, %v536
        %v774 = vmul.f32 %v772, %v537
        %v775 = vadd.f32 %v769, %v773
        %v776 = vadd.f32 %v770, %v774
        %s777 = sld [smem:[#allocation6 + $0xc]]
        %v778 = vstv %s777
        %v779 = vmul.f32 %v778, %v551
        %v780 = vmul.f32 %v778, %v552
        %v781 = vadd.f32 %v775, %v779
        %v782 = vadd.f32 %v776, %v780
        %s783 = sld [smem:[#allocation6 + $0xd]]
        %v784 = vstv %s783
        %v785 = vmul.f32 %v784, %v566
        %v786 = vmul.f32 %v784, %v567
        %v787 = vadd.f32 %v781, %v785
        %v788 = vadd.f32 %v782, %v786
        %s789 = sld [smem:[#allocation6 + $0x38]]
        %v790 = vstv %s789
        %v791 = vmul.f32 %v790, %v578
        %v792 = vmul.f32 %v790, %v579
        %v793 = vadd.f32 %v787, %v791
        %v794 = vadd.f32 %v788, %v792
        %s795 = sld [smem:[#allocation6 + $0x39]]
        %v796 = vstv %s795
        %v797 = vmul.f32 %v796, %v588
        %v798 = vmul.f32 %v796, %v589
        %v799 = vadd.f32 %v793, %v797
        %v800 = vadd.f32 %v794, %v798
        %s801 = sld [smem:[#allocation6 + $0x3a]]
        %v802 = vstv %s801
        %v803 = vmul.f32 %v802, %v598
        %v804 = vmul.f32 %v802, %v599
        %v805 = vadd.f32 %v799, %v803
        %v806 = vadd.f32 %v800, %v804
        %s807 = sld [smem:[#allocation6 + $0x3b]]
        %v808 = vstv %s807
        %v809 = vmul.f32 %v808, %v600
        %v810 = vmul.f32 %v808, %v601
        %v813 = vrot.slane %v809, 3
        %v814 = vrot.slane %v810, 3
        %v817 = vadd.f32 %v805, %v813
        %v818 = vadd.f32 %v806, %v814
        %s819 = sld [smem:[#allocation6 + $0x3c]]
        %v820 = vstv %s819
        %v821 = vmul.f32 %v820, %v610
        %v822 = vmul.f32 %v820, %v611
        %v823 = vadd.f32 %v817, %v821
        %v824 = vadd.f32 %v818, %v822
        %s825 = sld [smem:[#allocation6 + $0x3d]]
        %v826 = vstv %s825
        %v827 = vmul.f32 %v826, %v620
        %v828 = vmul.f32 %v826, %v621
        %v829 = vadd.f32 %v823, %v827
        %v830 = vadd.f32 %v824, %v828
        %s831 = sld [smem:[#allocation6 + $0x3e]]
        %v832 = vstv %s831
        %v833 = vmul.f32 %v832, %v630
        %v834 = vmul.f32 %v832, %v631
        %v835 = vadd.f32 %v829, %v833
        %v836 = vadd.f32 %v830, %v834
        %839 = vrot.lane.b32.xlu0 %v835, 32
        %v840 = vpop.permute.xlu0 %839
        %841 = vrot.lane.b32.xlu0 %v836, 32
        %v842 = vpop.permute.xlu0 %841
        %vm843 = vcmask 261120
        %v844 = vsel %vm843, %v840, %v842
        %v847 = vsel %vm843, 0.0, %v840
        %v850 = vrot.slane %v475, 1
        %v851 = vrot.slane %v476, 1
        %v854 = vmul.f32 %v847, %v850
        %v855 = vmul.f32 %v844, %v851
        %v856 = vadd.f32 %v741, %v854
        %v857 = vadd.f32 %v742, %v855
        %s858 = sld [smem:[#allocation6 + $0xe]]
        %v859 = vstv %s858
        %v860 = vmul.f32 %v859, %v488
        %v861 = vmul.f32 %v859, %v489
        %s862 = sld [smem:[#allocation6 + $0xf]]
        %v863 = vstv %s862
        %v864 = vmul.f32 %v863, %v504
        %v865 = vmul.f32 %v863, %v505
        %v866 = vadd.f32 %v860, %v864
        %v867 = vadd.f32 %v861, %v865
        %s868 = sld [smem:[#allocation6 + $0x10]]
        %v869 = vstv %s868
        %v870 = vmul.f32 %v869, %v519
        %v871 = vmul.f32 %v869, %v520
        %v872 = vadd.f32 %v866, %v870
        %v873 = vadd.f32 %v867, %v871
        %s874 = sld [smem:[#allocation6 + $0x11]]
        %v875 = vstv %s874
        %v876 = vmul.f32 %v875, %v521
        %v877 = vmul.f32 %v875, %v522
        %v880 = vrot.slane %v876, 3
        %v881 = vrot.slane %v877, 3
        %v884 = vadd.f32 %v872, %v880
        %v885 = vadd.f32 %v873, %v881
        %s886 = sld [smem:[#allocation6 + $0x12]]
        %v887 = vstv %s886
        %v888 = vmul.f32 %v887, %v536
        %v889 = vmul.f32 %v887, %v537
        %v890 = vadd.f32 %v884, %v888
        %v891 = vadd.f32 %v885, %v889
        %s892 = sld [smem:[#allocation6 + $0x13]]
        %v893 = vstv %s892
        %v894 = vmul.f32 %v893, %v551
        %v895 = vmul.f32 %v893, %v552
        %v896 = vadd.f32 %v890, %v894
        %v897 = vadd.f32 %v891, %v895
        %s898 = sld [smem:[#allocation6 + $0x14]]
        %v899 = vstv %s898
        %v900 = vmul.f32 %v899, %v566
        %v901 = vmul.f32 %v899, %v567
        %v902 = vadd.f32 %v896, %v900
        %v903 = vadd.f32 %v897, %v901
        %s904 = sld [smem:[#allocation6 + $0x3f]]
        %v905 = vstv %s904
        %v906 = vmul.f32 %v905, %v578
        %v907 = vmul.f32 %v905, %v579
        %v908 = vadd.f32 %v902, %v906
        %v909 = vadd.f32 %v903, %v907
        %s910 = sld [smem:[#allocation6 + $0x40]]
        %v911 = vstv %s910
        %v912 = vmul.f32 %v911, %v588
        %v913 = vmul.f32 %v911, %v589
        %v914 = vadd.f32 %v908, %v912
        %v915 = vadd.f32 %v909, %v913
        %s916 = sld [smem:[#allocation6 + $0x41]]
        %v917 = vstv %s916
        %v918 = vmul.f32 %v917, %v598
        %v919 = vmul.f32 %v917, %v599
        %v920 = vadd.f32 %v914, %v918
        %v921 = vadd.f32 %v915, %v919
        %s922 = sld [smem:[#allocation6 + $0x42]]
        %v923 = vstv %s922
        %v924 = vmul.f32 %v923, %v600
        %v925 = vmul.f32 %v923, %v601
        %v928 = vrot.slane %v924, 3
        %v929 = vrot.slane %v925, 3
        %v932 = vadd.f32 %v920, %v928
        %v933 = vadd.f32 %v921, %v929
        %s934 = sld [smem:[#allocation6 + $0x43]]
        %v935 = vstv %s934
        %v936 = vmul.f32 %v935, %v610
        %v937 = vmul.f32 %v935, %v611
        %v938 = vadd.f32 %v932, %v936
        %v939 = vadd.f32 %v933, %v937
        %s940 = sld [smem:[#allocation6 + $0x44]]
        %v941 = vstv %s940
        %v942 = vmul.f32 %v941, %v620
        %v943 = vmul.f32 %v941, %v621
        %v944 = vadd.f32 %v938, %v942
        %v945 = vadd.f32 %v939, %v943
        %s946 = sld [smem:[#allocation6 + $0x45]]
        %v947 = vstv %s946
        %v948 = vmul.f32 %v947, %v630
        %v949 = vmul.f32 %v947, %v631
        %v950 = vadd.f32 %v944, %v948
        %v951 = vadd.f32 %v945, %v949
        %954 = vrot.lane.b32.xlu0 %v950, 16
        %v955 = vpop.permute.xlu0 %954
        %956 = vrot.lane.b32.xlu0 %v951, 16
        %v957 = vpop.permute.xlu0 %956
        %vm958 = vcmask 130048
        %v959 = vsel %vm958, %v955, %v957
        %v962 = vsel %vm958, 0.0, %v955
        %v963 = vrot.slane %v475, 2
        %v964 = vrot.slane %v476, 2
        %v967 = vmul.f32 %v962, %v963
        %v968 = vmul.f32 %v959, %v964
        %v969 = vadd.f32 %v856, %v967
        %v970 = vadd.f32 %v857, %v968
        %s971 = sld [smem:[#allocation6 + $0x15]]
        %v972 = vstv %s971
        %v973 = vmul.f32 %v972, %v488
        %v974 = vmul.f32 %v972, %v489
        %s975 = sld [smem:[#allocation6 + $0x16]]
        %v976 = vstv %s975
        %v977 = vmul.f32 %v976, %v504
        %v978 = vmul.f32 %v976, %v505
        %v979 = vadd.f32 %v973, %v977
        %v980 = vadd.f32 %v974, %v978
        %s981 = sld [smem:[#allocation6 + $0x17]]
        %v982 = vstv %s981
        %v983 = vmul.f32 %v982, %v519
        %v984 = vmul.f32 %v982, %v520
        %v985 = vadd.f32 %v979, %v983
        %v986 = vadd.f32 %v980, %v984
        %s987 = sld [smem:[#allocation6 + $0x18]]
        %v988 = vstv %s987
        %v989 = vmul.f32 %v988, %v521
        %v990 = vmul.f32 %v988, %v522
        %v993 = vrot.slane %v989, 3
        %v994 = vrot.slane %v990, 3
        %v997 = vadd.f32 %v985, %v993
        %v998 = vadd.f32 %v986, %v994
        %s999 = sld [smem:[#allocation6 + $0x19]]
        %v1000 = vstv %s999
        %v1001 = vmul.f32 %v1000, %v536
        %v1002 = vmul.f32 %v1000, %v537
        %v1003 = vadd.f32 %v997, %v1001
        %v1004 = vadd.f32 %v998, %v1002
        %s1005 = sld [smem:[#allocation6 + $0x1a]]
        %v1006 = vstv %s1005
        %v1007 = vmul.f32 %v1006, %v551
        %v1008 = vmul.f32 %v1006, %v552
        %v1009 = vadd.f32 %v1003, %v1007
        %v1010 = vadd.f32 %v1004, %v1008
        %s1011 = sld [smem:[#allocation6 + $0x1b]]
        %v1012 = vstv %s1011
        %v1013 = vmul.f32 %v1012, %v566
        %v1014 = vmul.f32 %v1012, %v567
        %v1015 = vadd.f32 %v1009, %v1013
        %v1016 = vadd.f32 %v1010, %v1014
        %s1017 = sld [smem:[#allocation6 + $0x46]]
        %v1018 = vstv %s1017
        %v1019 = vmul.f32 %v1018, %v578
        %v1020 = vmul.f32 %v1018, %v579
        %v1021 = vadd.f32 %v1015, %v1019
        %v1022 = vadd.f32 %v1016, %v1020
        %s1023 = sld [smem:[#allocation6 + $0x47]]
        %v1024 = vstv %s1023
        %v1025 = vmul.f32 %v1024, %v588
        %v1026 = vmul.f32 %v1024, %v589
        %v1027 = vadd.f32 %v1021, %v1025
        %v1028 = vadd.f32 %v1022, %v1026
        %s1029 = sld [smem:[#allocation6 + $0x48]]
        %v1030 = vstv %s1029
        %v1031 = vmul.f32 %v1030, %v598
        %v1032 = vmul.f32 %v1030, %v599
        %v1033 = vadd.f32 %v1027, %v1031
        %v1034 = vadd.f32 %v1028, %v1032
        %s1035 = sld [smem:[#allocation6 + $0x49]]
        %v1036 = vstv %s1035
        %v1037 = vmul.f32 %v1036, %v600
        %v1038 = vmul.f32 %v1036, %v601
        %v1041 = vrot.slane %v1037, 3
        %v1042 = vrot.slane %v1038, 3
        %v1045 = vadd.f32 %v1033, %v1041
        %v1046 = vadd.f32 %v1034, %v1042
        %s1047 = sld [smem:[#allocation6 + $0x4a]]
        %v1048 = vstv %s1047
        %v1049 = vmul.f32 %v1048, %v610
        %v1050 = vmul.f32 %v1048, %v611
        %v1051 = vadd.f32 %v1045, %v1049
        %v1052 = vadd.f32 %v1046, %v1050
        %s1053 = sld [smem:[#allocation6 + $0x4b]]
        %v1054 = vstv %s1053
        %v1055 = vmul.f32 %v1054, %v620
        %v1056 = vmul.f32 %v1054, %v621
        %v1057 = vadd.f32 %v1051, %v1055
        %v1058 = vadd.f32 %v1052, %v1056
        %s1059 = sld [smem:[#allocation6 + $0x4c]]
        %v1060 = vstv %s1059
        %v1061 = vmul.f32 %v1060, %v630
        %v1062 = vmul.f32 %v1060, %v631
        %v1063 = vadd.f32 %v1057, %v1061
        %v1064 = vadd.f32 %v1058, %v1062
        %v1065 = vrot.slane %v475, 3
        %v1066 = vrot.slane %v476, 3
        %v1069 = vmul.f32 %v1063, %v1065
        %v1070 = vmul.f32 %v1064, %v1066
        %v1071 = vadd.f32 %v969, %v1069
        %v1072 = vadd.f32 %v970, %v1070
        %s1073 = sld [smem:[#allocation6 + $0x1c]]
        %v1074 = vstv %s1073
        %v1075 = vmul.f32 %v1074, %v488
        %v1076 = vmul.f32 %v1074, %v489
        %s1077 = sld [smem:[#allocation6 + $0x1d]]
        %v1078 = vstv %s1077
        %v1079 = vmul.f32 %v1078, %v504
        %v1080 = vmul.f32 %v1078, %v505
        %v1081 = vadd.f32 %v1075, %v1079
        %v1082 = vadd.f32 %v1076, %v1080
        %s1083 = sld [smem:[#allocation6 + $0x1e]]
        %v1084 = vstv %s1083
        %v1085 = vmul.f32 %v1084, %v519
        %v1086 = vmul.f32 %v1084, %v520
        %v1087 = vadd.f32 %v1081, %v1085
        %v1088 = vadd.f32 %v1082, %v1086
        %s1089 = sld [smem:[#allocation6 + $0x1f]]
        %v1090 = vstv %s1089
        %v1091 = vmul.f32 %v1090, %v521
        %v1092 = vmul.f32 %v1090, %v522
        %v1095 = vrot.slane %v1091, 3
        %v1096 = vrot.slane %v1092, 3
        %v1099 = vadd.f32 %v1087, %v1095
        %v1100 = vadd.f32 %v1088, %v1096
        %s1101 = sld [smem:[#allocation6 + $0x20]]
        %v1102 = vstv %s1101
        %v1103 = vmul.f32 %v1102, %v536
        %v1104 = vmul.f32 %v1102, %v537
        %v1105 = vadd.f32 %v1099, %v1103
        %v1106 = vadd.f32 %v1100, %v1104
        %s1107 = sld [smem:[#allocation6 + $0x21]]
        %v1108 = vstv %s1107
        %v1109 = vmul.f32 %v1108, %v551
        %v1110 = vmul.f32 %v1108, %v552
        %v1111 = vadd.f32 %v1105, %v1109
        %v1112 = vadd.f32 %v1106, %v1110
        %s1113 = sld [smem:[#allocation6 + $0x22]]
        %v1114 = vstv %s1113
        %v1115 = vmul.f32 %v1114, %v566
        %v1116 = vmul.f32 %v1114, %v567
        %v1117 = vadd.f32 %v1111, %v1115
        %v1118 = vadd.f32 %v1112, %v1116
        %s1119 = sld [smem:[#allocation6 + $0x4d]]
        %v1120 = vstv %s1119
        %v1121 = vmul.f32 %v1120, %v578
        %v1122 = vmul.f32 %v1120, %v579
        %v1123 = vadd.f32 %v1117, %v1121
        %v1124 = vadd.f32 %v1118, %v1122
        %s1125 = sld [smem:[#allocation6 + $0x4e]]
        %v1126 = vstv %s1125
        %v1127 = vmul.f32 %v1126, %v588
        %v1128 = vmul.f32 %v1126, %v589
        %v1129 = vadd.f32 %v1123, %v1127
        %v1130 = vadd.f32 %v1124, %v1128
        %s1131 = sld [smem:[#allocation6 + $0x4f]]
        %v1132 = vstv %s1131
        %v1133 = vmul.f32 %v1132, %v598
        %v1134 = vmul.f32 %v1132, %v599
        %v1135 = vadd.f32 %v1129, %v1133
        %v1136 = vadd.f32 %v1130, %v1134
        %s1137 = sld [smem:[#allocation6 + $0x50]]
        %v1138 = vstv %s1137
        %v1139 = vmul.f32 %v1138, %v600
        %v1140 = vmul.f32 %v1138, %v601
        %v1143 = vrot.slane %v1139, 3
        %v1144 = vrot.slane %v1140, 3
        %v1147 = vadd.f32 %v1135, %v1143
        %v1148 = vadd.f32 %v1136, %v1144
        %s1149 = sld [smem:[#allocation6 + $0x51]]
        %v1150 = vstv %s1149
        %v1151 = vmul.f32 %v1150, %v610
        %v1152 = vmul.f32 %v1150, %v611
        %v1153 = vadd.f32 %v1147, %v1151
        %v1154 = vadd.f32 %v1148, %v1152
        %s1155 = sld [smem:[#allocation6 + $0x52]]
        %v1156 = vstv %s1155
        %v1157 = vmul.f32 %v1156, %v620
        %v1158 = vmul.f32 %v1156, %v621
        %v1159 = vadd.f32 %v1153, %v1157
        %v1160 = vadd.f32 %v1154, %v1158
        %s1161 = sld [smem:[#allocation6 + $0x53]]
        %v1162 = vstv %s1161
        %v1163 = vmul.f32 %v1162, %v630
        %v1164 = vmul.f32 %v1162, %v631
        %v1165 = vadd.f32 %v1159, %v1163
        %v1166 = vadd.f32 %v1160, %v1164
        %1169 = vrot.lane.b32.xlu0 %v1165, 112
        %v1170 = vpop.permute.xlu0 %1169
        %1171 = vrot.lane.b32.xlu0 %v1166, 112
        %v1172 = vpop.permute.xlu0 %1171
        %vm1173 = vcmask 916480
        %v1174 = vsel %vm1173, %v1170, %v1172
        %v1177 = vsel %vm1173, %v1172, 0.0
        %v1178 = vrot.slane %v475, 4
        %v1179 = vrot.slane %v476, 4
        %v1182 = vmul.f32 %v1174, %v1178
        %v1183 = vmul.f32 %v1177, %v1179
        %v1184 = vadd.f32 %v1071, %v1182
        %v1185 = vadd.f32 %v1072, %v1183
        %s1186 = sld [smem:[#allocation6 + $0x23]]
        %v1187 = vstv %s1186
        %v1188 = vmul.f32 %v1187, %v488
        %v1189 = vmul.f32 %v1187, %v489
        %s1190 = sld [smem:[#allocation6 + $0x24]]
        %v1191 = vstv %s1190
        %v1192 = vmul.f32 %v1191, %v504
        %v1193 = vmul.f32 %v1191, %v505
        %v1194 = vadd.f32 %v1188, %v1192
        %v1195 = vadd.f32 %v1189, %v1193
        %s1196 = sld [smem:[#allocation6 + $0x25]]
        %v1197 = vstv %s1196
        %v1198 = vmul.f32 %v1197, %v519
        %v1199 = vmul.f32 %v1197, %v520
        %v1200 = vadd.f32 %v1194, %v1198
        %v1201 = vadd.f32 %v1195, %v1199
        %s1202 = sld [smem:[#allocation6 + $0x26]]
        %v1203 = vstv %s1202
        %v1204 = vmul.f32 %v1203, %v521
        %v1205 = vmul.f32 %v1203, %v522
        %v1208 = vrot.slane %v1204, 3
        %v1209 = vrot.slane %v1205, 3
        %v1212 = vadd.f32 %v1200, %v1208
        %v1213 = vadd.f32 %v1201, %v1209
        %s1214 = sld [smem:[#allocation6 + $0x27]]
        %v1215 = vstv %s1214
        %v1216 = vmul.f32 %v1215, %v536
        %v1217 = vmul.f32 %v1215, %v537
        %v1218 = vadd.f32 %v1212, %v1216
        %v1219 = vadd.f32 %v1213, %v1217
        %s1220 = sld [smem:[#allocation6 + $0x28]]
        %v1221 = vstv %s1220
        %v1222 = vmul.f32 %v1221, %v551
        %v1223 = vmul.f32 %v1221, %v552
        %v1224 = vadd.f32 %v1218, %v1222
        %v1225 = vadd.f32 %v1219, %v1223
        %s1226 = sld [smem:[#allocation6 + $0x29]]
        %v1227 = vstv %s1226
        %v1228 = vmul.f32 %v1227, %v566
        %v1229 = vmul.f32 %v1227, %v567
        %v1230 = vadd.f32 %v1224, %v1228
        %v1231 = vadd.f32 %v1225, %v1229
        %s1232 = sld [smem:[#allocation6 + $0x54]]
        %v1233 = vstv %s1232
        %v1234 = vmul.f32 %v1233, %v578
        %v1235 = vmul.f32 %v1233, %v579
        %v1236 = vadd.f32 %v1230, %v1234
        %v1237 = vadd.f32 %v1231, %v1235
        %s1238 = sld [smem:[#allocation6 + $0x55]]
        %v1239 = vstv %s1238
        %v1240 = vmul.f32 %v1239, %v588
        %v1241 = vmul.f32 %v1239, %v589
        %v1242 = vadd.f32 %v1236, %v1240
        %v1243 = vadd.f32 %v1237, %v1241
        %s1244 = sld [smem:[#allocation6 + $0x56]]
        %v1245 = vstv %s1244
        %v1246 = vmul.f32 %v1245, %v598
        %v1247 = vmul.f32 %v1245, %v599
        %v1248 = vadd.f32 %v1242, %v1246
        %v1249 = vadd.f32 %v1243, %v1247
        %s1250 = sld [smem:[#allocation6 + $0x57]]
        %v1251 = vstv %s1250
        %v1252 = vmul.f32 %v1251, %v600
        %v1253 = vmul.f32 %v1251, %v601
        %v1256 = vrot.slane %v1252, 3
        %v1257 = vrot.slane %v1253, 3
        %v1260 = vadd.f32 %v1248, %v1256
        %v1261 = vadd.f32 %v1249, %v1257
        %s1262 = sld [smem:[#allocation6 + $0x58]]
        %v1263 = vstv %s1262
        %v1264 = vmul.f32 %v1263, %v610
        %v1265 = vmul.f32 %v1263, %v611
        %v1266 = vadd.f32 %v1260, %v1264
        %v1267 = vadd.f32 %v1261, %v1265
        %s1268 = sld [smem:[#allocation6 + $0x59]]
        %v1269 = vstv %s1268
        %v1270 = vmul.f32 %v1269, %v620
        %v1271 = vmul.f32 %v1269, %v621
        %v1272 = vadd.f32 %v1266, %v1270
        %v1273 = vadd.f32 %v1267, %v1271
        %s1274 = sld [smem:[#allocation6 + $0x5a]]
        %v1275 = vstv %s1274
        %v1276 = vmul.f32 %v1275, %v630
        %v1277 = vmul.f32 %v1275, %v631
        %v1278 = vadd.f32 %v1272, %v1276
        %v1279 = vadd.f32 %v1273, %v1277
        %1282 = vrot.lane.b32.xlu0 %v1278, 96
        %v1283 = vpop.permute.xlu0 %1282
        %1284 = vrot.lane.b32.xlu0 %v1279, 96
        %v1285 = vpop.permute.xlu0 %1284
        %vm1286 = vcmask 785408
        %v1287 = vsel %vm1286, %v1283, %v1285
        %v1290 = vsel %vm1286, %v1285, 0.0
        %v1291 = vrot.slane %v475, 5
        %v1292 = vrot.slane %v476, 5
        %v1295 = vmul.f32 %v1287, %v1291
        %v1296 = vmul.f32 %v1290, %v1292
        %v1297 = vadd.f32 %v1184, %v1295
        %v1298 = vadd.f32 %v1185, %v1296
        %s1299 = sld [smem:[#allocation6 + $0x2a]]
        %v1300 = vstv %s1299
        %v1301 = vmul.f32 %v1300, %v488
        %v1302 = vmul.f32 %v1300, %v489
        %s1303 = sld [smem:[#allocation6 + $0x2b]]
        %v1304 = vstv %s1303
        %v1305 = vmul.f32 %v1304, %v504
        %v1306 = vmul.f32 %v1304, %v505
        %v1307 = vadd.f32 %v1301, %v1305
        %v1308 = vadd.f32 %v1302, %v1306
        %s1309 = sld [smem:[#allocation6 + $0x2c]]
        %v1310 = vstv %s1309
        %v1311 = vmul.f32 %v1310, %v519
        %v1312 = vmul.f32 %v1310, %v520
        %v1313 = vadd.f32 %v1307, %v1311
        %v1314 = vadd.f32 %v1308, %v1312
        %s1315 = sld [smem:[#allocation6 + $0x2d]]
        %v1316 = vstv %s1315
        %v1317 = vmul.f32 %v1316, %v521
        %v1318 = vmul.f32 %v1316, %v522
        %v1321 = vrot.slane %v1317, 3
        %v1322 = vrot.slane %v1318, 3
        %v1325 = vadd.f32 %v1313, %v1321
        %v1326 = vadd.f32 %v1314, %v1322
        %s1327 = sld [smem:[#allocation6 + $0x2e]]
        %v1328 = vstv %s1327
        %v1329 = vmul.f32 %v1328, %v536
        %v1330 = vmul.f32 %v1328, %v537
        %v1331 = vadd.f32 %v1325, %v1329
        %v1332 = vadd.f32 %v1326, %v1330
        %s1333 = sld [smem:[#allocation6 + $0x2f]]
        %v1334 = vstv %s1333
        %v1335 = vmul.f32 %v1334, %v551
        %v1336 = vmul.f32 %v1334, %v552
        %v1337 = vadd.f32 %v1331, %v1335
        %v1338 = vadd.f32 %v1332, %v1336
        %s1339 = sld [smem:[#allocation6 + $0x30]]
        %v1340 = vstv %s1339
        %v1341 = vmul.f32 %v1340, %v566
        %v1342 = vmul.f32 %v1340, %v567
        %v1343 = vadd.f32 %v1337, %v1341
        %v1344 = vadd.f32 %v1338, %v1342
        %s1345 = sld [smem:[#allocation6 + $0x5b]]
        %v1346 = vstv %s1345
        %v1347 = vmul.f32 %v1346, %v578
        %v1348 = vmul.f32 %v1346, %v579
        %v1349 = vadd.f32 %v1343, %v1347
        %v1350 = vadd.f32 %v1344, %v1348
        %s1351 = sld [smem:[#allocation6 + $0x5c]]
        %v1352 = vstv %s1351
        %v1353 = vmul.f32 %v1352, %v588
        %v1354 = vmul.f32 %v1352, %v589
        %v1355 = vadd.f32 %v1349, %v1353
        %v1356 = vadd.f32 %v1350, %v1354
        %s1357 = sld [smem:[#allocation6 + $0x5d]]
        %v1358 = vstv %s1357
        %v1359 = vmul.f32 %v1358, %v598
        %v1360 = vmul.f32 %v1358, %v599
        %v1361 = vadd.f32 %v1355, %v1359
        %v1362 = vadd.f32 %v1356, %v1360
        %s1363 = sld [smem:[#allocation6 + $0x5e]]
        %v1364 = vstv %s1363
        %v1365 = vmul.f32 %v1364, %v600
        %v1366 = vmul.f32 %v1364, %v601
        %v1369 = vrot.slane %v1365, 3
        %v1370 = vrot.slane %v1366, 3
        %v1373 = vadd.f32 %v1361, %v1369
        %v1374 = vadd.f32 %v1362, %v1370
        %s1375 = sld [smem:[#allocation6 + $0x5f]]
        %v1376 = vstv %s1375
        %v1377 = vmul.f32 %v1376, %v610
        %v1378 = vmul.f32 %v1376, %v611
        %v1379 = vadd.f32 %v1373, %v1377
        %v1380 = vadd.f32 %v1374, %v1378
        %s1381 = sld [smem:[#allocation6 + $0x60]]
        %v1382 = vstv %s1381
        %v1383 = vmul.f32 %v1382, %v620
        %v1384 = vmul.f32 %v1382, %v621
        %v1385 = vadd.f32 %v1379, %v1383
        %v1386 = vadd.f32 %v1380, %v1384
        %s1387 = sld [smem:[#allocation6 + $0x61]]
        %v1388 = vstv %s1387
        %v1389 = vmul.f32 %v1388, %v630
        %v1390 = vmul.f32 %v1388, %v631
        %v1391 = vadd.f32 %v1385, %v1389
        %v1392 = vadd.f32 %v1386, %v1390
        %1395 = vrot.lane.b32.xlu0 %v1391, 80
        %v1396 = vpop.permute.xlu0 %1395
        %1397 = vrot.lane.b32.xlu0 %v1392, 80
        %v1398 = vpop.permute.xlu0 %1397
        %vm1399 = vcmask 654336
        %v1400 = vsel %vm1399, %v1396, %v1398
        %v1403 = vsel %vm1399, %v1398, 0.0
        %v1404 = vrot.slane %v475, 6
        %v1405 = vrot.slane %v476, 6
        %v1408 = vmul.f32 %v1400, %v1404
        %v1409 = vmul.f32 %v1403, %v1405
        %v1410 = vadd.f32 %v1297, %v1408
        %v1411 = vadd.f32 %v1298, %v1409
        %v1412 = vxor.u32 %v1410, 2147483648
        %v1413 = vxor.u32 %v1411, 2147483648
        %v1414 = vmul.f32 %v1412, 1.442695
        %v1415 = vpow.pop %v1414
        %v1416 = vmul.f32 %v1413, 1.442695
        %v1417 = vpow.pop %v1416
        %v1418 = vadd.f32 %v1415, 1.0
        %v1419 = vadd.f32 %v1417, 1.0
        %v1420 = vrcp.pop %v1418
        %v1421 = vmul.f32 1.0, %v1420
        %v1422 = vrcp.pop %v1419
        %v1423 = vmul.f32 1.0, %v1422
        %v1424 = vlaneseq
        %v1425 = vshrl.u32 %v1424, 7
        %v1426 = vsub.s32 0, %v1425
        %v1427 = vrot.slane %v1421, %v1426
        %v1428 = vlaneseq
        %v1429 = vshrl.u32 %v1428, 7
        %v1430 = vsub.s32 0, %v1429
        %v1431 = vrot.slane %v1423, %v1430
        %v1432 = vmul.f32 %v426, %v1427
        %v1433 = vmul.f32 %v427, %v1431
        %v1434 = vmul.f32 %v428, %v1427
        %v1435 = vmul.f32 %v429, %v1431
        %v1436 = vmul.f32 %v430, %v1427
        %v1437 = vmul.f32 %v431, %v1431
        %v1438 = vmul.f32 %v432, %v1427
        %v1439 = vmul.f32 %v433, %v1431
        %1440 = vst [vmem:[%s283] sm:$0xff] %v1432
        %1441 = vst [vmem:[%s283 + $0x8] sm:$0xff] %v1433
        %1442 = vst [vmem:[%s283 + $0x10] sm:$0xff] %v1434
        %1443 = vst [vmem:[%s283 + $0x18] sm:$0xff] %v1435
        %1444 = vst [vmem:[%s283 + $0x20] sm:$0xff] %v1436
        %1445 = vst [vmem:[%s283 + $0x28] sm:$0xff] %v1437
        %1446 = vst [vmem:[%s283 + $0x30] sm:$0xff] %v1438
        %1447 = vst [vmem:[%s283 + $0x38] sm:$0xff] %v1439
        %s1448 = sand.u32 %s163, 1
        %s1449 = scalar_lea.sflag [#allocation4], %s1448
        %s1450 = sand.u32 %s163, 1
        %s1451 = smul.addr %s1450, 64
        %s1452 = scalar_lea.vmem [#allocation7], %s1451
        // Predicated region
        $region53: #{tpu_custom_call.1} parent=43 // pred_check
          %p1453 = pneg %p173
        $region54: #{tpu_custom_call.1} parent=43 // pred_check_branch
          %1455 = sbr.rel (%p1453) target = $region56
        $region55: #{tpu_custom_call.1} parent=43 // pred_region
          %s1457 = ssub.s32 1024, 1024
          %1458 = vsyncadd %s1449, %s1457
          %s1459 = smul.addr %s24, 8
          %s1460 = smul.addr %s1459, 128
          %s1461 = scalar_lea.hbm %s6, %s1460
          %s1462 = sshll.u32 %s1452, 4
          %s1463 = int_to_ptr.vmem [resolvable:$true] %s1462
          %1468 = dma.vmem_to_hbm [thread:$0]  %s1463, 1024, %s1461, %s1449, 256, 256, 16
        $region56: #{tpu_custom_call.1} parent=43 // pred_fallthru
          _
      $region44: #{tpu_custom_call.1} parent=5 // pred_fallthru
        _
      %p1469 = scmp.le.s32.totalorder 2, %s19
      // Predicated region
      $region57: #{tpu_custom_call.1} parent=5 // pred_check
        %p1470 = pneg %p1469
      $region58: #{tpu_custom_call.1} parent=5 // pred_check_branch
        %1472 = sbr.rel (%p1470) target = $region60
      $region59: #{tpu_custom_call.1} parent=5 // pred_region
        %s1473 = ssub.s32 %s19, 2
        // Predicated region
        $region61: #{tpu_custom_call.1} parent=59 // pred_check
          %p1474 = pneg %p179
        $region62: #{tpu_custom_call.1} parent=59 // pred_check_branch
          %1476 = sbr.rel (%p1474) target = $region64
        $region63: #{tpu_custom_call.1} parent=59 // pred_region
          %s1477 = sand.u32 %s164, 1
          %s1478 = scalar_lea.sflag [#allocation4], %s1477
          %s1479 = sand.u32 %s164, 1
          %s1480 = smul.addr %s1479, 64
          %s1481 = scalar_lea.vmem [#allocation7], %s1480
          %1482 = dma.done %s1478, 1024
        $region64: #{tpu_custom_call.1} parent=59 // pred_fallthru
          _
      $region60: #{tpu_custom_call.1} parent=5 // pred_fallthru
        _
    $region6: #{tpu_custom_call.1} parent=1 // loop_footer
      %s23 = sadd.s32 1, %s19
    $region7: #{tpu_custom_call.1} parent=1 // loop_footer_branch
      %18 = sbr.rel target = $region3
    $region8: #{tpu_custom_call.1} parent=1 // loop_exit
      _
    %1483 = vsyncpa [#allocation3], 1
    %s1484 = scalar_lea.sflag [#allocation3], 1
    %1485 = vsyncpa %s1484, 1
    %1486 = vsyncpa [#allocation4], 1
    %s1487 = scalar_lea.sflag [#allocation4], 1
    %1488 = vsyncpa %s1487, 1
    %1489 = vsyncpa [#allocation5], 1
    %s1490 = scalar_lea.sflag [#allocation5], 1
    %1491 = vsyncpa %s1490, 1

</llo_original>
